<compile_context>
chip_gen: v6e
topology: v6e:2x2x1
jax: 0.10.0
libtpu: 0.0.40
codegen_flags: <defaults>
</compile_context>

<pallas_src>
import functools

import jax
import jax.numpy as jnp
from jax.experimental import pallas as pl
from jax.experimental.pallas import tpu as pltpu

_LANE = 128       # minimum (8,128)-aligned tile edge
_MAX_TM = 256     # fill the 256x256 MXU of v6e / v7x
_MAX_TN = 512     # stream adj once per call when d_out is small (v5e HBM BW)
_MAX_TK = 512
_NOACC_K = 512    # whole reduction fits in one block -> drop the K grid axis


def _round_up(x: int, m: int) -> int:
    return (x + m - 1) // m * m


def _pad2(x: jax.Array, rows: int, cols: int) -> jax.Array:
    r, c = x.shape
    if r == rows and c == cols:
        return x
    return jnp.pad(x, ((0, rows - r), (0, cols - c)))


def _largest_tile(dim: int, cap: int) -> int:
    t = cap
    while t > _LANE and dim % t != 0:
        t //= 2
    return t


def _pick_tm(m: int) -> int:
    tm = _largest_tile(m, _MAX_TM)
    # Keep >= 2 blocks along the leading "parallel" axis when possible so the
    # two TensorCores of v7x both get work.
    if tm > _LANE and m // tm < 2:
        tm //= 2
    return tm


def _apply_act(x, activation):
    if activation == "tanh":
        return jnp.tanh(x)
    if activation == "sigmoid":
        return jax.nn.sigmoid(x)
    return x


# ----------------------------------------------------------------------------
# Tiled matmul kernels:  O = act(A @ B), f32 accumulation, activation fused.
# ----------------------------------------------------------------------------
def _matmul_acc_kernel(a_ref, b_ref, o_ref, acc_ref, *, activation):
    @pl.when(pl.program_id(2) == 0)
    def _init():
        acc_ref[...] = jnp.zeros_like(acc_ref)

    acc_ref[...] += jnp.dot(a_ref[...], b_ref[...],
                            preferred_element_type=jnp.float32)

    @pl.when(pl.program_id(2) == pl.num_programs(2) - 1)
    def _finalize():
        o_ref[...] = _apply_act(acc_ref[...], activation).astype(o_ref.dtype)


def _matmul_noacc_kernel(a_ref, b_ref, o_ref, *, activation):
    acc = jnp.dot(a_ref[...], b_ref[...], preferred_element_type=jnp.float32)
    o_ref[...] = _apply_act(acc, activation).astype(o_ref.dtype)


def _matmul(a: jax.Array, b: jax.Array, activation=None) -> jax.Array:
    """act(A @ B). A:(M,K), B:(K,N); all dims already multiples of 128."""
    M, K = a.shape
    K2, N = b.shape
    assert K == K2 and M % _LANE == 0 and N % _LANE == 0 and K % _LANE == 0
    tm = _pick_tm(M)
    tn = _largest_tile(N, _MAX_TN)

    if K <= _NOACC_K:
        # Whole reduction in one block: no accumulator scratch, no pl.when
        # branches, one fewer grid (pipeline-restart) dimension.
        kernel = functools.partial(_matmul_noacc_kernel, activation=activation)
        return pl.pallas_call(
            kernel,
            out_shape=jax.ShapeDtypeStruct((M, N), a.dtype),
            grid_spec=pltpu.PrefetchScalarGridSpec(
                num_scalar_prefetch=0,
                grid=(M // tm, N // tn),
                in_specs=[pl.BlockSpec((tm, K), lambda i, j: (i, 0)),
                          pl.BlockSpec((K, tn), lambda i, j: (0, j))],
                out_specs=pl.BlockSpec((tm, tn), lambda i, j: (i, j))),
            compiler_params=pltpu.CompilerParams(
                dimension_semantics=("parallel", "parallel")),
        )(a, b)

    tk = _largest_tile(K, _MAX_TK)
    kernel = functools.partial(_matmul_acc_kernel, activation=activation)
    return pl.pallas_call(
        kernel,
        out_shape=jax.ShapeDtypeStruct((M, N), a.dtype),
        grid_spec=pltpu.PrefetchScalarGridSpec(
            num_scalar_prefetch=0,
            grid=(M // tm, N // tn, K // tk),
            in_specs=[pl.BlockSpec((tm, tk), lambda i, j, k: (i, k)),
                      pl.BlockSpec((tk, tn), lambda i, j, k: (k, j))],
            out_specs=pl.BlockSpec((tm, tn), lambda i, j, k: (i, j)),
            scratch_shapes=[pltpu.VMEM((tm, tn), jnp.float32)]),
        compiler_params=pltpu.CompilerParams(
            dimension_semantics=("parallel", "parallel", "arbitrary")),
    )(a, b)


# ----------------------------------------------------------------------------
# GNNLayer / IGAE_decoder forward (operating in zero-padded space).
# ----------------------------------------------------------------------------
def _gnn_layer(x_pad, adj_pad, w_pad, active=True):
    support = _matmul(x_pad, w_pad, activation="tanh" if active else None)
    out = _matmul(adj_pad, support)      # torch.spmm(adj, support) (dense adj)
    az = _matmul(adj_pad, out)           # torch.spmm(adj, output)
    return out, az


def prepare_igae_decoder(adj, w4, w5, w6, name="acm"):
    """Pad the constant operands (adj, weights) once, outside the forward."""
    n_node = adj.shape[0]
    n_pad = _round_up(n_node, _LANE)
    adj_pad = _pad2(adj, n_pad, n_pad)

    def _prep_w(w):
        # dblp stores weight as (out, in) and uses F.linear -> X @ W.T;
        # otherwise weight is (in, out) and support = X @ W.
        w_eff = w.T if name == "dblp" else w
        k_in, k_out = w_eff.shape
        return (_pad2(w_eff, _round_up(k_in, _LANE), _round_up(k_out, _LANE)),
                int(k_out))

    w4_pad, d1 = _prep_w(w4)
    w5_pad, d2 = _prep_w(w5)
    w6_pad, d3 = _prep_w(w6)
    return adj_pad, (w4_pad, w5_pad, w6_pad), (int(n_node), d1, d2, d3)


def igae_decoder_forward(z_igae, adj_pad, w4_pad, w5_pad, w6_pad,
                         *, n_node, d1, d2, d3):
    """Forward on pre-padded constants; only z_igae is padded per call."""
    n_pad = adj_pad.shape[0]
    d_in = z_igae.shape[1]
    z_pad = _pad2(z_igae, n_pad, _round_up(d_in, _LANE))
    assert z_pad.shape[1] == w4_pad.shape[0]

    z1_pad, az1_pad = _gnn_layer(z_pad, adj_pad, w4_pad, active=True)
    z2_pad, az2_pad = _gnn_layer(z1_pad, adj_pad, w5_pad, active=True)
    zhat_pad, az3_pad = _gnn_layer(z2_pad, adj_pad, w6_pad, active=True)

    # sigmoid(Z_hat @ Z_hat.T): transpose the small (N, d) Z_hat once in XLA
    # and reuse the lane-dense A@B kernel (no in-loop XLU transpose).
    zhat_adj_pad = _matmul(zhat_pad, zhat_pad.T, activation="sigmoid")

    z_1 = z1_pad[:n_node, :d1]
    az_1 = az1_pad[:n_node, :d1]
    z_2 = z2_pad[:n_node, :d2]
    az_2 = az2_pad[:n_node, :d2]
    z_hat = zhat_pad[:n_node, :d3]
    az_3 = az3_pad[:n_node, :d3]
    z_hat_adj = zhat_adj_pad[:n_node, :n_node]
    return z_hat, z_hat_adj, [az_1, az_2, az_3], [z_1, z_2, z_hat]


def igae_decoder(z_igae, adj, w4, w5, w6, name="acm"):
    """Convenience wrapper matching the PyTorch module call signature."""
    adj_pad, w_pads, (n_node, d1, d2, d3) = prepare_igae_decoder(
        adj, w4, w5, w6, name=name)
    return igae_decoder_forward(z_igae, adj_pad, *w_pads,
                                n_node=n_node, d1=d1, d2=d2, d3=d3)


# ----------------------------------------------------------------------------
# Pure-JAX reference mirroring the PyTorch module.
# ----------------------------------------------------------------------------
def igae_decoder_ref(z_igae, adj, w4, w5, w6, name="acm"):
    P = jax.lax.Precision.HIGHEST

    def layer(x, w):
        w_eff = w.T if name == "dblp" else w
        s = jnp.tanh(jnp.dot(x, w_eff, precision=P))
        out = jnp.dot(adj, s, precision=P)
        az = jnp.dot(adj, out, precision=P)
        return out, az

    z1, az1 = layer(z_igae, w4)
    z2, az2 = layer(z1, w5)
    zhat, az3 = layer(z2, w6)
    zhat_adj = jax.nn.sigmoid(jnp.dot(zhat, zhat.T, precision=P))
    return zhat, zhat_adj, [az1, az2, az3], [z1, z2, zhat]


if __name__ == "__main__":
    key = jax.random.PRNGKey(0)
    name = "acm"  # non-dblp branch: weight is (in_features, out_features)

    # Small shapes consistent with the module's forward.
    n_node = 200
    gae_n_dec_1, gae_n_dec_2, gae_n_dec_3, n_input = 32, 64, 96, 160

    k1, k2, k3, k4, k5 = jax.random.split(key, 5)
    z_igae = jax.random.normal(k1, (n_node, gae_n_dec_1), jnp.float32)
    # Dense row-normalized adjacency stand-in for the sparse adj of torch.spmm.
    a_raw = jax.random.uniform(k2, (n_node, n_node), jnp.float32)
    adj = a_raw / jnp.sum(a_raw, axis=1, keepdims=True)

    def xavier(k, shape):
        fan_in, fan_out = shape
        lim = (6.0 / (fan_in + fan_out)) ** 0.5
        return jax.random.uniform(k, shape, jnp.float32, -lim, lim)

    w4 = xavier(k3, (gae_n_dec_1, gae_n_dec_2))
    w5 = xavier(k4, (gae_n_dec_2, gae_n_dec_3))
    w6 = xavier(k5, (gae_n_dec_3, n_input))

    # Constant operands padded once (hoisted out of the per-forward path).
    adj_pad, (w4_p, w5_p, w6_p), (n, d1, d2, d3) = prepare_igae_decoder(
        adj, w4, w5, w6, name=name)
    fwd = jax.jit(functools.partial(
        igae_decoder_forward, n_node=n, d1=d1, d2=d2, d3=d3))

    z_hat, z_hat_adj, az_list, z_list = fwd(z_igae, adj_pad, w4_p, w5_p, w6_p)
    jax.block_until_ready((z_hat, z_hat_adj, az_list, z_list))

    rz_hat, rz_hat_adj, raz_list, rz_list = igae_decoder_ref(
        z_igae, adj, w4, w5, w6, name=name)

    def check(a, b, tag):
        assert a.shape == b.shape, (tag, a.shape, b.shape)
        assert bool(jnp.allclose(a, b, atol=2e-3, rtol=2e-3)), f"mismatch: {tag}"

    check(z_hat, rz_hat, "z_hat")
    check(z_hat_adj, rz_hat_adj, "z_hat_adj")
    for i, (a, b) in enumerate(zip(az_list, raz_list)):
        check(a, b, f"az_{i + 1}")
    for i, (a, b) in enumerate(zip(z_list, rz_list)):
        check(a, b, f"z_{i + 1}")

    assert z_hat.shape == (n_node, n_input)
    assert z_hat_adj.shape == (n_node, n_node)

    print("KERNEL_OK")
</pallas_src>

<mosaic_0001>
module attributes {stable_mosaic.version = 11 : i64} {
  func.func @_matmul_noacc_kernel(%arg0: i32, %arg1: i32, %arg2: memref<128x128xf32, #tpu.memory_space<vmem>>, %arg3: memref<128x128xf32, #tpu.memory_space<vmem>>, %arg4: memref<128x128xf32, #tpu.memory_space<vmem>>) attributes {dimension_semantics = [#tpu.dimension_semantics<parallel>, #tpu.dimension_semantics<parallel>], iteration_bounds = array<i64: 2, 1>, scalar_prefetch = 0 : i64, scratch_operands = 0 : i64, tpu.core_type = #tpu.core_type<tc>, window_params = [{transform_indices = @transform_0, window_bounds = array<i64: 128, 128>}, {transform_indices = @transform_1, window_bounds = array<i64: 128, 128>}, {transform_indices = @transform_2, window_bounds = array<i64: 128, 128>}]} {
    %c0 = arith.constant 0 : index
    %c0_0 = arith.constant 0 : index
    %0 = vector.load %arg2[%c0, %c0_0] : memref<128x128xf32, #tpu.memory_space<vmem>>, vector<128x128xf32>
    %c0_1 = arith.constant 0 : index
    %c0_2 = arith.constant 0 : index
    %1 = vector.load %arg3[%c0_1, %c0_2] : memref<128x128xf32, #tpu.memory_space<vmem>>, vector<128x128xf32>
    %cst = arith.constant dense<0.000000e+00> : vector<128x128xf32>
    %2 = tpu.matmul %0, %1, %cst {dimension_numbers = #tpu.dot_dimension_numbers<[1], [0], [0], [1], [0, 0, 1, 1], [], []>} : vector<128x128xf32>, vector<128x128xf32>, vector<128x128xf32> -> vector<128x128xf32>
    %3 = math.tanh %2 : vector<128x128xf32>
    %c0_3 = arith.constant 0 : index
    %c0_4 = arith.constant 0 : index
    %4 = vector.load %arg4[%c0_3, %c0_4] : memref<128x128xf32, #tpu.memory_space<vmem>>, vector<128x128xf32>
    tpu.vector_store %arg4[%c0_3, %c0_4], %3 {strides = array<i32>} : memref<128x128xf32, #tpu.memory_space<vmem>>, vector<128x128xf32>,
    return
  }
  func.func @transform_0(%arg0: i32, %arg1: i32) -> (i32, i32) {
    %c0_i32 = arith.constant 0 : i32
    %c0_i32_0 = arith.constant 0 : i32
    return %arg0, %c0_i32 : i32, i32
  }
  func.func @transform_1(%arg0: i32, %arg1: i32) -> (i32, i32) {
    %c0_i32 = arith.constant 0 : i32
    %c0_i32_0 = arith.constant 0 : i32
    return %c0_i32, %arg1 : i32, i32
  }
  func.func @transform_2(%arg0: i32, %arg1: i32) -> (i32, i32) {
    %c0_i32 = arith.constant 0 : i32
    return %arg0, %arg1 : i32, i32
  }
}

module attributes {stable_mosaic.version = 11 : i64} {
  func.func @_matmul_noacc_kernel(%arg0: i32, %arg1: i32, %arg2: memref<128x256xf32, #tpu.memory_space<vmem>>, %arg3: memref<256x128xf32, #tpu.memory_space<vmem>>, %arg4: memref<128x128xf32, #tpu.memory_space<vmem>>) attributes {dimension_semantics = [#tpu.dimension_semantics<parallel>, #tpu.dimension_semantics<parallel>], iteration_bounds = array<i64: 2, 1>, scalar_prefetch = 0 : i64, scratch_operands = 0 : i64, tpu.core_type = #tpu.core_type<tc>, window_params = [{transform_indices = @transform_0, window_bounds = array<i64: 128, 256>}, {transform_indices = @transform_1, window_bounds = array<i64: 256, 128>}, {transform_indices = @transform_2, window_bounds = array<i64: 128, 128>}]} {
    %c0 = arith.constant 0 : index
    %c0_0 = arith.constant 0 : index
    %0 = vector.load %arg2[%c0, %c0_0] : memref<128x256xf32, #tpu.memory_space<vmem>>, vector<128x256xf32>
    %c0_1 = arith.constant 0 : index
    %c0_2 = arith.constant 0 : index
    %1 = vector.load %arg3[%c0_1, %c0_2] : memref<256x128xf32, #tpu.memory_space<vmem>>, vector<256x128xf32>
    %cst = arith.constant dense<0.000000e+00> : vector<128x128xf32>
    %2 = tpu.matmul %0, %1, %cst {dimension_numbers = #tpu.dot_dimension_numbers<[1], [0], [0], [1], [0, 0, 1, 1], [], []>} : vector<128x256xf32>, vector<256x128xf32>, vector<128x128xf32> -> vector<128x128xf32>
    %c0_3 = arith.constant 0 : index
    %c0_4 = arith.constant 0 : index
    %3 = vector.load %arg4[%c0_3, %c0_4] : memref<128x128xf32, #tpu.memory_space<vmem>>, vector<128x128xf32>
    tpu.vector_store %arg4[%c0_3, %c0_4], %2 {strides = array<i32>} : memref<128x128xf32, #tpu.memory_space<vmem>>, vector<128x128xf32>,
    return
  }
  func.func @transform_0(%arg0: i32, %arg1: i32) -> (i32, i32) {
    %c0_i32 = arith.constant 0 : i32
    %c0_i32_0 = arith.constant 0 : i32
    return %arg0, %c0_i32 : i32, i32
  }
  func.func @transform_1(%arg0: i32, %arg1: i32) -> (i32, i32) {
    %c0_i32 = arith.constant 0 : i32
    %c0_i32_0 = arith.constant 0 : i32
    return %c0_i32, %arg1 : i32, i32
  }
  func.func @transform_2(%arg0: i32, %arg1: i32) -> (i32, i32) {
    %c0_i32 = arith.constant 0 : i32
    return %arg0, %arg1 : i32, i32
  }
}

module attributes {stable_mosaic.version = 11 : i64} {
  func.func @_matmul_noacc_kernel(%arg0: i32, %arg1: i32, %arg2: memref<128x128xf32, #tpu.memory_space<vmem>>, %arg3: memref<128x256xf32, #tpu.memory_space<vmem>>, %arg4: memref<128x256xf32, #tpu.memory_space<vmem>>) attributes {dimension_semantics = [#tpu.dimension_semantics<parallel>, #tpu.dimension_semantics<parallel>], iteration_bounds = array<i64: 2, 1>, scalar_prefetch = 0 : i64, scratch_operands = 0 : i64, tpu.core_type = #tpu.core_type<tc>, window_params = [{transform_indices = @transform_0, window_bounds = array<i64: 128, 128>}, {transform_indices = @transform_1, window_bounds = array<i64: 128, 256>}, {transform_indices = @transform_2, window_bounds = array<i64: 128, 256>}]} {
    %c0 = arith.constant 0 : index
    %c0_0 = arith.constant 0 : index
    %0 = vector.load %arg2[%c0, %c0_0] : memref<128x128xf32, #tpu.memory_space<vmem>>, vector<128x128xf32>
    %c0_1 = arith.constant 0 : index
    %c0_2 = arith.constant 0 : index
    %1 = vector.load %arg3[%c0_1, %c0_2] : memref<128x256xf32, #tpu.memory_space<vmem>>, vector<128x256xf32>
    %cst = arith.constant dense<0.000000e+00> : vector<128x256xf32>
    %2 = tpu.matmul %0, %1, %cst {dimension_numbers = #tpu.dot_dimension_numbers<[1], [0], [0], [1], [0, 0, 1, 1], [], []>} : vector<128x128xf32>, vector<128x256xf32>, vector<128x256xf32> -> vector<128x256xf32>
    %3 = math.tanh %2 : vector<128x256xf32>
    %c0_3 = arith.constant 0 : index
    %c0_4 = arith.constant 0 : index
    %4 = vector.load %arg4[%c0_3, %c0_4] : memref<128x256xf32, #tpu.memory_space<vmem>>, vector<128x256xf32>
    tpu.vector_store %arg4[%c0_3, %c0_4], %3 {strides = array<i32>} : memref<128x256xf32, #tpu.memory_space<vmem>>, vector<128x256xf32>,
    return
  }
  func.func @transform_0(%arg0: i32, %arg1: i32) -> (i32, i32) {
    %c0_i32 = arith.constant 0 : i32
    %c0_i32_0 = arith.constant 0 : i32
    return %arg0, %c0_i32 : i32, i32
  }
  func.func @transform_1(%arg0: i32, %arg1: i32) -> (i32, i32) {
    %c0_i32 = arith.constant 0 : i32
    %c0_i32_0 = arith.constant 0 : i32
    return %c0_i32, %arg1 : i32, i32
  }
  func.func @transform_2(%arg0: i32, %arg1: i32) -> (i32, i32) {
    %c0_i32 = arith.constant 0 : i32
    return %arg0, %arg1 : i32, i32
  }
}

module attributes {stable_mosaic.version = 11 : i64} {
  func.func @_matmul_noacc_kernel(%arg0: i32, %arg1: i32, %arg2: memref<128x256xf32, #tpu.memory_space<vmem>>, %arg3: memref<256x256xf32, #tpu.memory_space<vmem>>, %arg4: memref<128x256xf32, #tpu.memory_space<vmem>>) attributes {dimension_semantics = [#tpu.dimension_semantics<parallel>, #tpu.dimension_semantics<parallel>], iteration_bounds = array<i64: 2, 1>, scalar_prefetch = 0 : i64, scratch_operands = 0 : i64, tpu.core_type = #tpu.core_type<tc>, window_params = [{transform_indices = @transform_0, window_bounds = array<i64: 128, 256>}, {transform_indices = @transform_1, window_bounds = array<i64: 256, 256>}, {transform_indices = @transform_2, window_bounds = array<i64: 128, 256>}]} {
    %c0 = arith.constant 0 : index
    %c0_0 = arith.constant 0 : index
    %0 = vector.load %arg2[%c0, %c0_0] : memref<128x256xf32, #tpu.memory_space<vmem>>, vector<128x256xf32>
    %c0_1 = arith.constant 0 : index
    %c0_2 = arith.constant 0 : index
    %1 = vector.load %arg3[%c0_1, %c0_2] : memref<256x256xf32, #tpu.memory_space<vmem>>, vector<256x256xf32>
    %cst = arith.constant dense<0.000000e+00> : vector<128x256xf32>
    %2 = tpu.matmul %0, %1, %cst {dimension_numbers = #tpu.dot_dimension_numbers<[1], [0], [0], [1], [0, 0, 1, 1], [], []>} : vector<128x256xf32>, vector<256x256xf32>, vector<128x256xf32> -> vector<128x256xf32>
    %c0_3 = arith.constant 0 : index
    %c0_4 = arith.constant 0 : index
    %3 = vector.load %arg4[%c0_3, %c0_4] : memref<128x256xf32, #tpu.memory_space<vmem>>, vector<128x256xf32>
    tpu.vector_store %arg4[%c0_3, %c0_4], %2 {strides = array<i32>} : memref<128x256xf32, #tpu.memory_space<vmem>>, vector<128x256xf32>,
    return
  }
  func.func @transform_0(%arg0: i32, %arg1: i32) -> (i32, i32) {
    %c0_i32 = arith.constant 0 : i32
    %c0_i32_0 = arith.constant 0 : i32
    return %arg0, %c0_i32 : i32, i32
  }
  func.func @transform_1(%arg0: i32, %arg1: i32) -> (i32, i32) {
    %c0_i32 = arith.constant 0 : i32
    %c0_i32_0 = arith.constant 0 : i32
    return %c0_i32, %arg1 : i32, i32
  }
  func.func @transform_2(%arg0: i32, %arg1: i32) -> (i32, i32) {
    %c0_i32 = arith.constant 0 : i32
    return %arg0, %arg1 : i32, i32
  }
}

module attributes {stable_mosaic.version = 11 : i64} {
  func.func @_matmul_noacc_kernel(%arg0: i32, %arg1: i32, %arg2: memref<128x256xf32, #tpu.memory_space<vmem>>, %arg3: memref<256x256xf32, #tpu.memory_space<vmem>>, %arg4: memref<128x256xf32, #tpu.memory_space<vmem>>) attributes {dimension_semantics = [#tpu.dimension_semantics<parallel>, #tpu.dimension_semantics<parallel>], iteration_bounds = array<i64: 2, 1>, scalar_prefetch = 0 : i64, scratch_operands = 0 : i64, tpu.core_type = #tpu.core_type<tc>, window_params = [{transform_indices = @transform_0, window_bounds = array<i64: 128, 256>}, {transform_indices = @transform_1, window_bounds = array<i64: 256, 256>}, {transform_indices = @transform_2, window_bounds = array<i64: 128, 256>}]} {
    %c0 = arith.constant 0 : index
    %c0_0 = arith.constant 0 : index
    %0 = vector.load %arg2[%c0, %c0_0] : memref<128x256xf32, #tpu.memory_space<vmem>>, vector<128x256xf32>
    %c0_1 = arith.constant 0 : index
    %c0_2 = arith.constant 0 : index
    %1 = vector.load %arg3[%c0_1, %c0_2] : memref<256x256xf32, #tpu.memory_space<vmem>>, vector<256x256xf32>
    %cst = arith.constant dense<0.000000e+00> : vector<128x256xf32>
    %2 = tpu.matmul %0, %1, %cst {dimension_numbers = #tpu.dot_dimension_numbers<[1], [0], [0], [1], [0, 0, 1, 1], [], []>} : vector<128x256xf32>, vector<256x256xf32>, vector<128x256xf32> -> vector<128x256xf32>
    %3 = arith.negf %2 : vector<128x256xf32>
    %4 = math.exp %3 : vector<128x256xf32>
    %cst_3 = arith.constant 1.000000e+00 : f32
    %5 = vector.broadcast %cst_3 : f32 to vector<128x256xf32>
    %6 = arith.addf %5, %4 : vector<128x256xf32>
    %7 = arith.divf %5, %6 : vector<128x256xf32>
    %c0_4 = arith.constant 0 : index
    %c0_5 = arith.constant 0 : index
    %8 = vector.load %arg4[%c0_4, %c0_5] : memref<128x256xf32, #tpu.memory_space<vmem>>, vector<128x256xf32>
    tpu.vector_store %arg4[%c0_4, %c0_5], %7 {strides = array<i32>} : memref<128x256xf32, #tpu.memory_space<vmem>>, vector<128x256xf32>,
    return
  }
  func.func @transform_0(%arg0: i32, %arg1: i32) -> (i32, i32) {
    %c0_i32 = arith.constant 0 : i32
    %c0_i32_0 = arith.constant 0 : i32
    return %arg0, %c0_i32 : i32, i32
  }
  func.func @transform_1(%arg0: i32, %arg1: i32) -> (i32, i32) {
    %c0_i32 = arith.constant 0 : i32
    %c0_i32_0 = arith.constant 0 : i32
    return %c0_i32, %arg1 : i32, i32
  }
  func.func @transform_2(%arg0: i32, %arg1: i32) -> (i32, i32) {
    %c0_i32 = arith.constant 0 : i32
    return %arg0, %arg1 : i32, i32
  }
}

</mosaic_0001>

<llo_original>
// kernel: igae_decoder_forward.10
$region0: #{igae_decoder_forward.10}
  #allocation0 [shape = 'u32[]', space=smem, size = 0x4, offset = 0x4, fixed_abs, tag = 'smem constant byte address 0x4 - core index']
  #allocation1 [shape = 'u32[144,128]{1,0:T(1,128)}', space=vmem, size = 0x12000, scoped, tag = 'internal scratch']
  %s0 = inlined_call_operand.vmem [shape: f32[256,128], index: 0, kind: input, shape index: {}]
  %s1 = inlined_call_operand.vmem [shape: f32[128,128], index: 1, kind: input, shape index: {}]
  %s2 = inlined_call_operand.vmem [shape: f32[256,128], index: 2, kind: output, shape index: {}]
  %s3 = sld [smem:[#allocation0]]
  $region41: #{igae_decoder_forward.10} parent=0
    _
  %s5 = ssub.s32 1, %s3
  %s6 = scalar_select 0, %s5, %s3
  loop: start=0, step=1, limit=4
  $region2: #{igae_decoder_forward.10} parent=0 // loop_pre_header
    _
  $region3: #{igae_decoder_forward.10} parent=0 // loop_header
    %s8 = sphi 0, %s12
    %p9 = scmp.ge.s32.totalorder %s8, 4
    %s15 = sphi 0, %s27
    %s16 = sphi 0, %s23
    %s17 = sphi 0, %s15
    %s18 = sphi 0, %s16
    %s19 = sphi 0, %s17
    %s20 = sphi 0, %s18
    %s30 = sphi 0, %s32
    %s33 = sphi 0, %s30
    %s34 = sphi 0, %s33
    %s50 = sphi 0, %s34
    %s56 = sphi 0, %s58
    %s59 = sphi 0, %s56
    %s60 = sphi 0, %s59
    %s76 = sphi 0, %s60
    %s84 = sphi 0, %s86
    %s87 = sphi 0, %s84
    %s88 = sphi 0, %s87
    %s104 = sphi 0, %s88
  $region4: #{igae_decoder_forward.10} parent=0 // loop_header_branch
    %11 = sbr.rel (%p9) target = $region8
  $region5: #{igae_decoder_forward.10} parent=0 // loop_body
    %s13 = ssub.s32 %s8, 1
    %s14 = ssub.s32 %s8, 2
    %s21 = sadd.s32 1, %s16
    %p22 = scmp.ge.s32.totalorder %s21, 1
    %s23 = scalar_select %p22, 0, %s21
    %s24 = sadd.s32 1, %s15
    %s25 = scalar_select %p22, %s24, %s15
    %p26 = scmp.ge.s32.totalorder %s25, 2
    %s27 = scalar_select %p26, 0, %s25
    %s28 = ssub.s32 %s15, %s27
    %p29 = scmp.eq.s32.totalorder %s28, 0
    %s31 = sadd.s32 %s30, 1
    %s32 = scalar_select %p29, %s30, %s31
    %p35 = pneg %p29
    %p36 = scmp.eq.s32.totalorder %s8, 1
    %p37 = por %p35, %p36
    %p38 = scmp.ne.s32.totalorder %s30, %s33
    %p39 = scmp.eq.s32.totalorder %s8, 0
    %p40 = por %p38, %p39
    %p41 = scmp.ne.s32.totalorder %s30, %s33
    %p42 = scmp.eq.s32.totalorder %s13, 1
    %p43 = por %p41, %p42
    %p44 = scmp.ne.s32.totalorder %s33, %s34
    %p45 = scmp.eq.s32.totalorder %s13, 0
    %p46 = por %p44, %p45
    %p47 = scmp.ne.s32.totalorder %s33, %s34
    %p48 = scmp.eq.s32.totalorder %s14, 1
    %p49 = por %p47, %p48
    %p51 = scmp.ne.s32.totalorder %s34, %s50
    %p52 = scmp.eq.s32.totalorder %s14, 0
    %p53 = por %p51, %p52
    %s54 = ssub.s32 %s16, %s23
    %p55 = scmp.eq.s32.totalorder %s54, 0
    %s57 = sadd.s32 %s56, 1
    %s58 = scalar_select %p55, %s56, %s57
    %p61 = pneg %p55
    %p62 = scmp.eq.s32.totalorder %s8, 1
    %p63 = por %p61, %p62
    %p64 = scmp.ne.s32.totalorder %s56, %s59
    %p65 = scmp.eq.s32.totalorder %s8, 0
    %p66 = por %p64, %p65
    %p67 = scmp.ne.s32.totalorder %s56, %s59
    %p68 = scmp.eq.s32.totalorder %s13, 1
    %p69 = por %p67, %p68
    %p70 = scmp.ne.s32.totalorder %s59, %s60
    %p71 = scmp.eq.s32.totalorder %s13, 0
    %p72 = por %p70, %p71
    %p73 = scmp.ne.s32.totalorder %s59, %s60
    %p74 = scmp.eq.s32.totalorder %s14, 1
    %p75 = por %p73, %p74
    %p77 = scmp.ne.s32.totalorder %s60, %s76
    %p78 = scmp.eq.s32.totalorder %s14, 0
    %p79 = por %p77, %p78
    %s80 = ssub.s32 %s15, %s27
    %s81 = ssub.s32 %s16, %s23
    %s82 = sor.u32 %s80, %s81
    %p83 = scmp.eq.s32.totalorder %s82, 0
    %s85 = sadd.s32 %s84, 1
    %s86 = scalar_select %p83, %s84, %s85
    %p89 = pneg %p83
    %p90 = scmp.eq.s32.totalorder %s8, 1
    %p91 = por %p89, %p90
    %p92 = scmp.ne.s32.totalorder %s84, %s87
    %p93 = scmp.eq.s32.totalorder %s8, 0
    %p94 = por %p92, %p93
    %p95 = scmp.ne.s32.totalorder %s84, %s87
    %p96 = scmp.eq.s32.totalorder %s13, 1
    %p97 = por %p95, %p96
    %p98 = scmp.ne.s32.totalorder %s87, %s88
    %p99 = scmp.eq.s32.totalorder %s13, 0
    %p100 = por %p98, %p99
    %p101 = scmp.ne.s32.totalorder %s87, %s88
    %p102 = scmp.eq.s32.totalorder %s14, 1
    %p103 = por %p101, %p102
    %p105 = scmp.ne.s32.totalorder %s88, %s104
    %p106 = scmp.eq.s32.totalorder %s14, 0
    %p107 = por %p105, %p106
    %p108 = scmp.le.s32.totalorder 1, %s8
    %p109 = scmp.lt.s32.totalorder %s8, 3
    %p110 = pnand %p108, %p109
    %p111 = pneg %p110
    // Predicated region
    $region9: #{igae_decoder_forward.10} parent=5 // pred_check
      _
    $region10: #{igae_decoder_forward.10} parent=5 // pred_check_branch
      %113 = sbr.rel (%p110) target = $region12
    $region11: #{igae_decoder_forward.10} parent=5 // pred_region
      %s114 = ssub.s32 %s8, 1
      // Predicated region
      $region13: #{igae_decoder_forward.10} parent=11 // pred_check
        %p115 = pneg %p72
      $region14: #{igae_decoder_forward.10} parent=11 // pred_check_branch
        %117 = sbr.rel (%p115) target = $region16
      $region15: #{igae_decoder_forward.10} parent=11 // pred_region
        %p118 = scmp.lt.s32.totalorder %s18, 0
        %s119 = scalar_select %p118, %s18, 0
        %s120 = smul.addr %s119, 8
        %s121 = scalar_lea.vmem %s1, %s120
      $region16: #{igae_decoder_forward.10} parent=11 // pred_fallthru
        _
    $region12: #{igae_decoder_forward.10} parent=5 // pred_fallthru
      _
    %p122 = scmp.lt.s32.totalorder %s8, 2
    // Predicated region
    $region17: #{igae_decoder_forward.10} parent=5 // pred_check
      %p123 = pneg %p122
    $region18: #{igae_decoder_forward.10} parent=5 // pred_check_branch
      %125 = sbr.rel (%p123) target = $region20
    $region19: #{igae_decoder_forward.10} parent=5 // pred_region
      // Predicated region
      $region21: #{igae_decoder_forward.10} parent=19 // pred_check
        %p126 = pneg %p40
      $region22: #{igae_decoder_forward.10} parent=19 // pred_check_branch
        %128 = sbr.rel (%p126) target = $region24
      $region23: #{igae_decoder_forward.10} parent=19 // pred_region
        %s129 = smul.u32 16, %s15
        %p130 = scmp.lt.s32.totalorder %s129, 31
        %s131 = scalar_select %p130, %s129, 31
        %s132 = smul.addr %s131, 8
        %s133 = scalar_lea.vmem %s0, %s132
        %s134 = smul.u32 16, %s15
      $region24: #{igae_decoder_forward.10} parent=19 // pred_fallthru
        _
    $region20: #{igae_decoder_forward.10} parent=5 // pred_fallthru
      _
    %p135 = scmp.le.s32.totalorder 1, %s8
    %p136 = scmp.lt.s32.totalorder %s8, 3
    %p137 = pnand %p135, %p136
    %p138 = pneg %p137
    // Predicated region
    $region25: #{igae_decoder_forward.10} parent=5 // pred_check
      _
    $region26: #{igae_decoder_forward.10} parent=5 // pred_check_branch
      %140 = sbr.rel (%p137) target = $region28
    $region27: #{igae_decoder_forward.10} parent=5 // pred_region
      %s141 = ssub.s32 %s8, 1
      %s142 = smul.u32 16, %s17
      %p143 = scmp.lt.s32.totalorder %s142, 31
      %s144 = scalar_select %p143, %s142, 31
      %s145 = smul.addr %s144, 8
      %s146 = scalar_lea.vmem %s0, %s145
      %p147 = pneg %p46
      %p148 = pneg %p43
      %p149 = scmp.lt.s32.totalorder %s18, 0
      %s150 = scalar_select %p149, %s18, 0
      %s151 = smul.addr %s150, 8
      %s152 = scalar_lea.vmem %s1, %s151
      %p153 = pneg %p72
      %p154 = pneg %p69
      %p155 = pneg %p100
      %p156 = pneg %p97
      %s157 = smul.u32 16, %s17
      %p158 = scmp.lt.s32.totalorder %s157, 31
      %s159 = scalar_select %p158, %s157, 31
      %p160 = scmp.lt.s32.totalorder %s18, 0
      %s161 = scalar_select %p160, %s18, 0
      %s162 = sadd.s32 %s161, %s159
      %s163 = smul.addr %s162, 8
      %s164 = scalar_lea.vmem %s2, %s163
      %s165 = smul.u32 16, %s17
      %p166 = scmp.lt.s32.totalorder %s165, 31
      %s167 = scalar_select %p166, %s165, 31
      %s168 = smul.addr %s167, 8
      %s169 = scalar_lea.vmem %s0, %s168
      %s170 = smul.u32 16, %s17
      %p171 = scmp.lt.s32.totalorder %s18, 0
      %s172 = scalar_select %p171, %s18, 0
      %s173 = smul.addr %s172, 8
      %s174 = scalar_lea.vmem %s1, %s173
      %s175 = smul.u32 16, %s17
      %p176 = scmp.lt.s32.totalorder %s175, 31
      %s177 = scalar_select %p176, %s175, 31
      %p178 = scmp.lt.s32.totalorder %s18, 0
      %s179 = scalar_select %p178, %s18, 0
      %s180 = sadd.s32 %s179, %s177
      %s181 = smul.addr %s180, 8
      %s182 = scalar_lea.vmem %s2, %s181
      %s183 = smul.u32 16, %s17
      %v184 = vld [vmem:[%s169] sm:$0xff]
      %v185 = vld [vmem:[%s169 + $0x8] sm:$0xff]
      %v186 = vld [vmem:[%s169 + $0x10] sm:$0xff]
      %v187 = vld [vmem:[%s169 + $0x18] sm:$0xff]
      %v188 = vld [vmem:[%s169 + $0x20] sm:$0xff]
      %v189 = vld [vmem:[%s169 + $0x28] sm:$0xff]
      %v190 = vld [vmem:[%s169 + $0x30] sm:$0xff]
      %v191 = vld [vmem:[%s169 + $0x38] sm:$0xff]
      %v192 = vld [vmem:[%s169 + $0x40] sm:$0xff]
      %v193 = vld [vmem:[%s169 + $0x48] sm:$0xff]
      %v194 = vld [vmem:[%s169 + $0x50] sm:$0xff]
      %v195 = vld [vmem:[%s169 + $0x58] sm:$0xff]
      %v196 = vld [vmem:[%s169 + $0x60] sm:$0xff]
      %v197 = vld [vmem:[%s169 + $0x68] sm:$0xff]
      %v198 = vld [vmem:[%s169 + $0x70] sm:$0xff]
      %v199 = vld [vmem:[%s169 + $0x78] sm:$0xff]
      %v200 = vld [vmem:[%s174] sm:$0xff]
      %v201 = vld [vmem:[%s174 + $0x8] sm:$0xff]
      %v202 = vld [vmem:[%s174 + $0x10] sm:$0xff]
      %v203 = vld [vmem:[%s174 + $0x18] sm:$0xff]
      %v204 = vld [vmem:[%s174 + $0x20] sm:$0xff]
      %v205 = vld [vmem:[%s174 + $0x28] sm:$0xff]
      %v206 = vld [vmem:[%s174 + $0x30] sm:$0xff]
      %v207 = vld [vmem:[%s174 + $0x38] sm:$0xff]
      %v208 = vld [vmem:[%s174 + $0x40] sm:$0xff]
      %v209 = vld [vmem:[%s174 + $0x48] sm:$0xff]
      %v210 = vld [vmem:[%s174 + $0x50] sm:$0xff]
      %v211 = vld [vmem:[%s174 + $0x58] sm:$0xff]
      %v212 = vld [vmem:[%s174 + $0x60] sm:$0xff]
      %v213 = vld [vmem:[%s174 + $0x68] sm:$0xff]
      %v214 = vld [vmem:[%s174 + $0x70] sm:$0xff]
      %v215 = vld [vmem:[%s174 + $0x78] sm:$0xff]
      %216 = vmatprep.subr.mxu0 0.0
      %217 = vmatpush1.msra.mxu0 %v215
      %218 = vmatprep.subr.mxu0 0.0
      %219 = vmatpush1.msra.mxu0 %v214
      %220 = vmatprep.subr.mxu0 0.0
      %221 = vmatpush1.msra.mxu0 %v213
      %222 = vmatprep.subr.mxu0 0.0
      %223 = vmatpush1.msra.mxu0 %v212
      %224 = vmatprep.subr.mxu0 0.0
      %225 = vmatpush1.msra.mxu0 %v211
      %226 = vmatprep.subr.mxu0 0.0
      %227 = vmatpush1.msra.mxu0 %v210
      %228 = vmatprep.subr.mxu0 0.0
      %229 = vmatpush1.msra.mxu0 %v209
      %230 = vmatprep.subr.mxu0 0.0
      %231 = vmatpush1.msra.mxu0 %v208
      %232 = vmatprep.subr.mxu0 0.0
      %233 = vmatpush1.msra.mxu0 %v207
      %234 = vmatprep.subr.mxu0 0.0
      %235 = vmatpush1.msra.mxu0 %v206
      %236 = vmatprep.subr.mxu0 0.0
      %237 = vmatpush1.msra.mxu0 %v205
      %238 = vmatprep.subr.mxu0 0.0
      %239 = vmatpush1.msra.mxu0 %v204
      %240 = vmatprep.subr.mxu0 0.0
      %241 = vmatpush1.msra.mxu0 %v203
      %242 = vmatprep.subr.mxu0 0.0
      %243 = vmatpush1.msra.mxu0 %v202
      %244 = vmatprep.subr.mxu0 0.0
      %245 = vmatpush1.msra.mxu0 %v201
      %246 = vmatprep.subr.mxu0 0.0
      %247 = vmatpush1.msra.mxu0 %v200
      %248 = vmatprep.subr.mxu0 0.0
      %249 = vmatpush2.msra.mxu0 0.0
      %250 = vmatprep.subr.mxu0 0.0
      %251 = vmatpush2.msra.mxu0 0.0
      %252 = vmatprep.subr.mxu0 0.0
      %253 = vmatpush2.msra.mxu0 0.0
      %254 = vmatprep.subr.mxu0 0.0
      %255 = vmatpush2.msra.mxu0 0.0
      %256 = vmatprep.subr.mxu0 0.0
      %257 = vmatpush2.msra.mxu0 0.0
      %258 = vmatprep.subr.mxu0 0.0
      %259 = vmatpush2.msra.mxu0 0.0
      %260 = vmatprep.subr.mxu0 0.0
      %261 = vmatpush2.msra.mxu0 0.0
      %262 = vmatprep.subr.mxu0 0.0
      %263 = vmatpush2.msra.mxu0 0.0
      %264 = vmatprep.subr.mxu0 0.0
      %265 = vmatpush2.msra.mxu0 0.0
      %266 = vmatprep.subr.mxu0 0.0
      %267 = vmatpush2.msra.mxu0 0.0
      %268 = vmatprep.subr.mxu0 0.0
      %269 = vmatpush2.msra.mxu0 0.0
      %270 = vmatprep.subr.mxu0 0.0
      %271 = vmatpush2.msra.mxu0 0.0
      %272 = vmatprep.subr.mxu0 0.0
      %273 = vmatpush2.msra.mxu0 0.0
      %274 = vmatprep.subr.mxu0 0.0
      %275 = vmatpush2.msra.mxu0 0.0
      %276 = vmatprep.subr.mxu0 0.0
      %277 = vmatpush2.msra.mxu0 0.0
      %278 = vmatprep.subr.mxu0 0.0
      %279 = vmatpush2.msra.mxu0 0.0
      %280 = vmatprep.mubr.f32.mxu0 0.0
      %281 = vmatmul.mubr.f32.gmra.mxu0 %v184
      %v282 = vpop.f32.mrf.mxu0
      %v283 = vadd.f32 0.0, %v282
      %v284 = vpop.f32.mrf.mxu0
      %285 = vmatprep.mubr.f32.mxu0 0.0
      %286 = vmatmul.mubr.f32.gmra.mxu0 %v185
      %v287 = vpop.f32.mrf.mxu0
      %v288 = vadd.f32 0.0, %v287
      %v289 = vpop.f32.mrf.mxu0
      %290 = vmatprep.mubr.f32.mxu0 0.0
      %291 = vmatmul.mubr.f32.gmra.mxu0 %v186
      %v292 = vpop.f32.mrf.mxu0
      %v293 = vadd.f32 0.0, %v292
      %v294 = vpop.f32.mrf.mxu0
      %295 = vmatprep.mubr.f32.mxu0 0.0
      %296 = vmatmul.mubr.f32.gmra.mxu0 %v187
      %v297 = vpop.f32.mrf.mxu0
      %v298 = vadd.f32 0.0, %v297
      %v299 = vpop.f32.mrf.mxu0
      %300 = vmatprep.mubr.f32.mxu0 0.0
      %301 = vmatmul.mubr.f32.gmra.mxu0 %v188
      %v302 = vpop.f32.mrf.mxu0
      %v303 = vadd.f32 0.0, %v302
      %v304 = vpop.f32.mrf.mxu0
      %305 = vmatprep.mubr.f32.mxu0 0.0
      %306 = vmatmul.mubr.f32.gmra.mxu0 %v189
      %v307 = vpop.f32.mrf.mxu0
      %v308 = vadd.f32 0.0, %v307
      %v309 = vpop.f32.mrf.mxu0
      %310 = vmatprep.mubr.f32.mxu0 0.0
      %311 = vmatmul.mubr.f32.gmra.mxu0 %v190
      %v312 = vpop.f32.mrf.mxu0
      %v313 = vadd.f32 0.0, %v312
      %v314 = vpop.f32.mrf.mxu0
      %315 = vmatprep.mubr.f32.mxu0 0.0
      %316 = vmatmul.mubr.f32.gmra.mxu0 %v191
      %v317 = vpop.f32.mrf.mxu0
      %v318 = vadd.f32 0.0, %v317
      %v319 = vpop.f32.mrf.mxu0
      %320 = vmatprep.mubr.f32.mxu0 0.0
      %321 = vmatmul.mubr.f32.gmra.mxu0 %v192
      %v322 = vpop.f32.mrf.mxu0
      %v323 = vadd.f32 0.0, %v322
      %v324 = vpop.f32.mrf.mxu0
      %325 = vmatprep.mubr.f32.mxu0 0.0
      %326 = vmatmul.mubr.f32.gmra.mxu0 %v193
      %v327 = vpop.f32.mrf.mxu0
      %v328 = vadd.f32 0.0, %v327
      %v329 = vpop.f32.mrf.mxu0
      %330 = vmatprep.mubr.f32.mxu0 0.0
      %331 = vmatmul.mubr.f32.gmra.mxu0 %v194
      %v332 = vpop.f32.mrf.mxu0
      %v333 = vadd.f32 0.0, %v332
      %v334 = vpop.f32.mrf.mxu0
      %335 = vmatprep.mubr.f32.mxu0 0.0
      %336 = vmatmul.mubr.f32.gmra.mxu0 %v195
      %v337 = vpop.f32.mrf.mxu0
      %v338 = vadd.f32 0.0, %v337
      %v339 = vpop.f32.mrf.mxu0
      %340 = vmatprep.mubr.f32.mxu0 0.0
      %341 = vmatmul.mubr.f32.gmra.mxu0 %v196
      %v342 = vpop.f32.mrf.mxu0
      %v343 = vadd.f32 0.0, %v342
      %v344 = vpop.f32.mrf.mxu0
      %345 = vmatprep.mubr.f32.mxu0 0.0
      %346 = vmatmul.mubr.f32.gmra.mxu0 %v197
      %v347 = vpop.f32.mrf.mxu0
      %v348 = vadd.f32 0.0, %v347
      %v349 = vpop.f32.mrf.mxu0
      %350 = vmatprep.mubr.f32.mxu0 0.0
      %351 = vmatmul.mubr.f32.gmra.mxu0 %v198
      %v352 = vpop.f32.mrf.mxu0
      %v353 = vadd.f32 0.0, %v352
      %v354 = vpop.f32.mrf.mxu0
      %355 = vmatprep.mubr.f32.mxu0 0.0
      %356 = vmatmul.mubr.f32.gmra.mxu0 %v199
      %v357 = vpop.f32.mrf.mxu0
      %v358 = vadd.f32 0.0, %v357
      %v359 = vpop.f32.mrf.mxu0
      %360 = vdwg.mxu0
      %v361 = vtanh.pop %v283
      %v362 = vtanh.pop %v288
      %v363 = vtanh.pop %v293
      %v364 = vtanh.pop %v298
      %v365 = vtanh.pop %v303
      %v366 = vtanh.pop %v308
      %v367 = vtanh.pop %v313
      %v368 = vtanh.pop %v318
      %v369 = vtanh.pop %v323
      %v370 = vtanh.pop %v328
      %v371 = vtanh.pop %v333
      %v372 = vtanh.pop %v338
      %v373 = vtanh.pop %v343
      %v374 = vtanh.pop %v348
      %v375 = vtanh.pop %v353
      %v376 = vtanh.pop %v358
      %377 = vst [vmem:[%s182] sm:$0xff] %v361
      %378 = vst [vmem:[%s182 + $0x8] sm:$0xff] %v362
      %379 = vst [vmem:[%s182 + $0x10] sm:$0xff] %v363
      %380 = vst [vmem:[%s182 + $0x18] sm:$0xff] %v364
      %381 = vst [vmem:[%s182 + $0x20] sm:$0xff] %v365
      %382 = vst [vmem:[%s182 + $0x28] sm:$0xff] %v366
      %383 = vst [vmem:[%s182 + $0x30] sm:$0xff] %v367
      %384 = vst [vmem:[%s182 + $0x38] sm:$0xff] %v368
      %385 = vst [vmem:[%s182 + $0x40] sm:$0xff] %v369
      %386 = vst [vmem:[%s182 + $0x48] sm:$0xff] %v370
      %387 = vst [vmem:[%s182 + $0x50] sm:$0xff] %v371
      %388 = vst [vmem:[%s182 + $0x58] sm:$0xff] %v372
      %389 = vst [vmem:[%s182 + $0x60] sm:$0xff] %v373
      %390 = vst [vmem:[%s182 + $0x68] sm:$0xff] %v374
      %391 = vst [vmem:[%s182 + $0x70] sm:$0xff] %v375
      %392 = vst [vmem:[%s182 + $0x78] sm:$0xff] %v376
      %s393 = smul.u32 16, %s17
      %p394 = scmp.lt.s32.totalorder %s393, 31
      %s395 = scalar_select %p394, %s393, 31
      %p396 = scmp.lt.s32.totalorder %s18, 0
      %s397 = scalar_select %p396, %s18, 0
      %s398 = sadd.s32 %s397, %s395
      %s399 = smul.addr %s398, 8
      %s400 = scalar_lea.vmem %s2, %s399
      // Predicated region
      $region29: #{igae_decoder_forward.10} parent=27 // pred_check
        %p401 = pneg %p97
      $region30: #{igae_decoder_forward.10} parent=27 // pred_check_branch
        %403 = sbr.rel (%p401) target = $region32
      $region31: #{igae_decoder_forward.10} parent=27 // pred_region
        %s404 = smul.u32 16, %s17
      $region32: #{igae_decoder_forward.10} parent=27 // pred_fallthru
        _
    $region28: #{igae_decoder_forward.10} parent=5 // pred_fallthru
      _
    %p405 = scmp.le.s32.totalorder 2, %s8
    // Predicated region
    $region33: #{igae_decoder_forward.10} parent=5 // pred_check
      %p406 = pneg %p405
    $region34: #{igae_decoder_forward.10} parent=5 // pred_check_branch
      %408 = sbr.rel (%p406) target = $region36
    $region35: #{igae_decoder_forward.10} parent=5 // pred_region
      %s409 = ssub.s32 %s8, 2
      // Predicated region
      $region37: #{igae_decoder_forward.10} parent=35 // pred_check
        %p410 = pneg %p103
      $region38: #{igae_decoder_forward.10} parent=35 // pred_check_branch
        %412 = sbr.rel (%p410) target = $region40
      $region39: #{igae_decoder_forward.10} parent=35 // pred_region
        %s413 = smul.u32 16, %s19
        %p414 = scmp.lt.s32.totalorder %s413, 31
        %s415 = scalar_select %p414, %s413, 31
        %p416 = scmp.lt.s32.totalorder %s20, 0
        %s417 = scalar_select %p416, %s20, 0
        %s418 = sadd.s32 %s417, %s415
        %s419 = smul.addr %s418, 8
        %s420 = scalar_lea.vmem %s2, %s419
      $region40: #{igae_decoder_forward.10} parent=35 // pred_fallthru
        _
    $region36: #{igae_decoder_forward.10} parent=5 // pred_fallthru
      _
  $region6: #{igae_decoder_forward.10} parent=0 // loop_footer
    %s12 = sadd.s32 1, %s8
  $region7: #{igae_decoder_forward.10} parent=0 // loop_footer_branch
    %7 = sbr.rel target = $region3
  $region8: #{igae_decoder_forward.10} parent=0 // loop_exit
    _

// kernel: igae_decoder_forward.11
$region0: #{igae_decoder_forward.11}
  #allocation0 [shape = 'u32[]', space=smem, size = 0x4, offset = 0x4, fixed_abs, tag = 'smem constant byte address 0x4 - core index']
  #allocation1 [shape = 'u32[144,128]{1,0:T(1,128)}', space=vmem, size = 0x12000, scoped, tag = 'internal scratch']
  %s0 = inlined_call_operand.vmem [shape: f32[256,256], index: 0, kind: input, shape index: {}]
  %s1 = inlined_call_operand.vmem [shape: f32[256,128], index: 1, kind: input, shape index: {}]
  %s2 = inlined_call_operand.vmem [shape: f32[256,128], index: 2, kind: output, shape index: {}]
  %s3 = sld [smem:[#allocation0]]
  $region41: #{igae_decoder_forward.11} parent=0
    _
  %s5 = ssub.s32 1, %s3
  %s6 = scalar_select 0, %s5, %s3
  loop: start=0, step=1, limit=4
  $region2: #{igae_decoder_forward.11} parent=0 // loop_pre_header
    _
  $region3: #{igae_decoder_forward.11} parent=0 // loop_header
    %s8 = sphi 0, %s12
    %p9 = scmp.ge.s32.totalorder %s8, 4
    %s15 = sphi 0, %s27
    %s16 = sphi 0, %s23
    %s17 = sphi 0, %s15
    %s18 = sphi 0, %s16
    %s19 = sphi 0, %s17
    %s20 = sphi 0, %s18
    %s30 = sphi 0, %s32
    %s33 = sphi 0, %s30
    %s34 = sphi 0, %s33
    %s50 = sphi 0, %s34
    %s56 = sphi 0, %s58
    %s59 = sphi 0, %s56
    %s60 = sphi 0, %s59
    %s76 = sphi 0, %s60
    %s84 = sphi 0, %s86
    %s87 = sphi 0, %s84
    %s88 = sphi 0, %s87
    %s104 = sphi 0, %s88
  $region4: #{igae_decoder_forward.11} parent=0 // loop_header_branch
    %11 = sbr.rel (%p9) target = $region8
  $region5: #{igae_decoder_forward.11} parent=0 // loop_body
    %s13 = ssub.s32 %s8, 1
    %s14 = ssub.s32 %s8, 2
    %s21 = sadd.s32 1, %s16
    %p22 = scmp.ge.s32.totalorder %s21, 1
    %s23 = scalar_select %p22, 0, %s21
    %s24 = sadd.s32 1, %s15
    %s25 = scalar_select %p22, %s24, %s15
    %p26 = scmp.ge.s32.totalorder %s25, 2
    %s27 = scalar_select %p26, 0, %s25
    %s28 = ssub.s32 %s15, %s27
    %p29 = scmp.eq.s32.totalorder %s28, 0
    %s31 = sadd.s32 %s30, 1
    %s32 = scalar_select %p29, %s30, %s31
    %p35 = pneg %p29
    %p36 = scmp.eq.s32.totalorder %s8, 1
    %p37 = por %p35, %p36
    %p38 = scmp.ne.s32.totalorder %s30, %s33
    %p39 = scmp.eq.s32.totalorder %s8, 0
    %p40 = por %p38, %p39
    %p41 = scmp.ne.s32.totalorder %s30, %s33
    %p42 = scmp.eq.s32.totalorder %s13, 1
    %p43 = por %p41, %p42
    %p44 = scmp.ne.s32.totalorder %s33, %s34
    %p45 = scmp.eq.s32.totalorder %s13, 0
    %p46 = por %p44, %p45
    %p47 = scmp.ne.s32.totalorder %s33, %s34
    %p48 = scmp.eq.s32.totalorder %s14, 1
    %p49 = por %p47, %p48
    %p51 = scmp.ne.s32.totalorder %s34, %s50
    %p52 = scmp.eq.s32.totalorder %s14, 0
    %p53 = por %p51, %p52
    %s54 = ssub.s32 %s16, %s23
    %p55 = scmp.eq.s32.totalorder %s54, 0
    %s57 = sadd.s32 %s56, 1
    %s58 = scalar_select %p55, %s56, %s57
    %p61 = pneg %p55
    %p62 = scmp.eq.s32.totalorder %s8, 1
    %p63 = por %p61, %p62
    %p64 = scmp.ne.s32.totalorder %s56, %s59
    %p65 = scmp.eq.s32.totalorder %s8, 0
    %p66 = por %p64, %p65
    %p67 = scmp.ne.s32.totalorder %s56, %s59
    %p68 = scmp.eq.s32.totalorder %s13, 1
    %p69 = por %p67, %p68
    %p70 = scmp.ne.s32.totalorder %s59, %s60
    %p71 = scmp.eq.s32.totalorder %s13, 0
    %p72 = por %p70, %p71
    %p73 = scmp.ne.s32.totalorder %s59, %s60
    %p74 = scmp.eq.s32.totalorder %s14, 1
    %p75 = por %p73, %p74
    %p77 = scmp.ne.s32.totalorder %s60, %s76
    %p78 = scmp.eq.s32.totalorder %s14, 0
    %p79 = por %p77, %p78
    %s80 = ssub.s32 %s15, %s27
    %s81 = ssub.s32 %s16, %s23
    %s82 = sor.u32 %s80, %s81
    %p83 = scmp.eq.s32.totalorder %s82, 0
    %s85 = sadd.s32 %s84, 1
    %s86 = scalar_select %p83, %s84, %s85
    %p89 = pneg %p83
    %p90 = scmp.eq.s32.totalorder %s8, 1
    %p91 = por %p89, %p90
    %p92 = scmp.ne.s32.totalorder %s84, %s87
    %p93 = scmp.eq.s32.totalorder %s8, 0
    %p94 = por %p92, %p93
    %p95 = scmp.ne.s32.totalorder %s84, %s87
    %p96 = scmp.eq.s32.totalorder %s13, 1
    %p97 = por %p95, %p96
    %p98 = scmp.ne.s32.totalorder %s87, %s88
    %p99 = scmp.eq.s32.totalorder %s13, 0
    %p100 = por %p98, %p99
    %p101 = scmp.ne.s32.totalorder %s87, %s88
    %p102 = scmp.eq.s32.totalorder %s14, 1
    %p103 = por %p101, %p102
    %p105 = scmp.ne.s32.totalorder %s88, %s104
    %p106 = scmp.eq.s32.totalorder %s14, 0
    %p107 = por %p105, %p106
    %p108 = scmp.le.s32.totalorder 1, %s8
    %p109 = scmp.lt.s32.totalorder %s8, 3
    %p110 = pnand %p108, %p109
    %p111 = pneg %p110
    // Predicated region
    $region9: #{igae_decoder_forward.11} parent=5 // pred_check
      _
    $region10: #{igae_decoder_forward.11} parent=5 // pred_check_branch
      %113 = sbr.rel (%p110) target = $region12
    $region11: #{igae_decoder_forward.11} parent=5 // pred_region
      %s114 = ssub.s32 %s8, 1
      // Predicated region
      $region13: #{igae_decoder_forward.11} parent=11 // pred_check
        %p115 = pneg %p72
      $region14: #{igae_decoder_forward.11} parent=11 // pred_check_branch
        %117 = sbr.rel (%p115) target = $region16
      $region15: #{igae_decoder_forward.11} parent=11 // pred_region
        %p118 = scmp.lt.s32.totalorder %s18, 0
        %s119 = scalar_select %p118, %s18, 0
        %s120 = smul.addr %s119, 8
        %s121 = scalar_lea.vmem %s1, %s120
      $region16: #{igae_decoder_forward.11} parent=11 // pred_fallthru
        _
    $region12: #{igae_decoder_forward.11} parent=5 // pred_fallthru
      _
    %p122 = scmp.lt.s32.totalorder %s8, 2
    // Predicated region
    $region17: #{igae_decoder_forward.11} parent=5 // pred_check
      %p123 = pneg %p122
    $region18: #{igae_decoder_forward.11} parent=5 // pred_check_branch
      %125 = sbr.rel (%p123) target = $region20
    $region19: #{igae_decoder_forward.11} parent=5 // pred_region
      // Predicated region
      $region21: #{igae_decoder_forward.11} parent=19 // pred_check
        %p126 = pneg %p40
      $region22: #{igae_decoder_forward.11} parent=19 // pred_check_branch
        %128 = sbr.rel (%p126) target = $region24
      $region23: #{igae_decoder_forward.11} parent=19 // pred_region
        %s129 = smul.u32 16, %s15
        %p130 = scmp.lt.s32.totalorder %s129, 31
        %s131 = scalar_select %p130, %s129, 31
        %s132 = smul.addr %s131, 2
        %s133 = smul.addr %s132, 8
        %s134 = scalar_lea.vmem %s0, %s133
        %s135 = smul.u32 16, %s15
      $region24: #{igae_decoder_forward.11} parent=19 // pred_fallthru
        _
    $region20: #{igae_decoder_forward.11} parent=5 // pred_fallthru
      _
    %p136 = scmp.le.s32.totalorder 1, %s8
    %p137 = scmp.lt.s32.totalorder %s8, 3
    %p138 = pnand %p136, %p137
    %p139 = pneg %p138
    // Predicated region
    $region25: #{igae_decoder_forward.11} parent=5 // pred_check
      _
    $region26: #{igae_decoder_forward.11} parent=5 // pred_check_branch
      %141 = sbr.rel (%p138) target = $region28
    $region27: #{igae_decoder_forward.11} parent=5 // pred_region
      %s142 = ssub.s32 %s8, 1
      %s143 = smul.u32 16, %s17
      %p144 = scmp.lt.s32.totalorder %s143, 31
      %s145 = scalar_select %p144, %s143, 31
      %s146 = smul.addr %s145, 2
      %s147 = smul.addr %s146, 8
      %s148 = scalar_lea.vmem %s0, %s147
      %p149 = pneg %p46
      %p150 = pneg %p43
      %p151 = scmp.lt.s32.totalorder %s18, 0
      %s152 = scalar_select %p151, %s18, 0
      %s153 = smul.addr %s152, 8
      %s154 = scalar_lea.vmem %s1, %s153
      %p155 = pneg %p72
      %p156 = pneg %p69
      %p157 = pneg %p100
      %p158 = pneg %p97
      %s159 = smul.u32 16, %s17
      %p160 = scmp.lt.s32.totalorder %s159, 31
      %s161 = scalar_select %p160, %s159, 31
      %p162 = scmp.lt.s32.totalorder %s18, 0
      %s163 = scalar_select %p162, %s18, 0
      %s164 = sadd.s32 %s163, %s161
      %s165 = smul.addr %s164, 8
      %s166 = scalar_lea.vmem %s2, %s165
      %s167 = smul.u32 16, %s17
      %p168 = scmp.lt.s32.totalorder %s167, 31
      %s169 = scalar_select %p168, %s167, 31
      %s170 = smul.addr %s169, 2
      %s171 = smul.addr %s170, 8
      %s172 = scalar_lea.vmem %s0, %s171
      %s173 = smul.u32 16, %s17
      %p174 = scmp.lt.s32.totalorder %s18, 0
      %s175 = scalar_select %p174, %s18, 0
      %s176 = smul.addr %s175, 8
      %s177 = scalar_lea.vmem %s1, %s176
      %s178 = smul.u32 16, %s17
      %p179 = scmp.lt.s32.totalorder %s178, 31
      %s180 = scalar_select %p179, %s178, 31
      %p181 = scmp.lt.s32.totalorder %s18, 0
      %s182 = scalar_select %p181, %s18, 0
      %s183 = sadd.s32 %s182, %s180
      %s184 = smul.addr %s183, 8
      %s185 = scalar_lea.vmem %s2, %s184
      %s186 = smul.u32 16, %s17
      %v187 = vld [vmem:[%s172] sm:$0xff]
      %v188 = vld [vmem:[%s172 + $0x8] sm:$0xff]
      %v189 = vld [vmem:[%s172 + $0x10] sm:$0xff]
      %v190 = vld [vmem:[%s172 + $0x18] sm:$0xff]
      %v191 = vld [vmem:[%s172 + $0x20] sm:$0xff]
      %v192 = vld [vmem:[%s172 + $0x28] sm:$0xff]
      %v193 = vld [vmem:[%s172 + $0x30] sm:$0xff]
      %v194 = vld [vmem:[%s172 + $0x38] sm:$0xff]
      %v195 = vld [vmem:[%s172 + $0x40] sm:$0xff]
      %v196 = vld [vmem:[%s172 + $0x48] sm:$0xff]
      %v197 = vld [vmem:[%s172 + $0x50] sm:$0xff]
      %v198 = vld [vmem:[%s172 + $0x58] sm:$0xff]
      %v199 = vld [vmem:[%s172 + $0x60] sm:$0xff]
      %v200 = vld [vmem:[%s172 + $0x68] sm:$0xff]
      %v201 = vld [vmem:[%s172 + $0x70] sm:$0xff]
      %v202 = vld [vmem:[%s172 + $0x78] sm:$0xff]
      %v203 = vld [vmem:[%s172 + $0x80] sm:$0xff]
      %v204 = vld [vmem:[%s172 + $0x88] sm:$0xff]
      %v205 = vld [vmem:[%s172 + $0x90] sm:$0xff]
      %v206 = vld [vmem:[%s172 + $0x98] sm:$0xff]
      %v207 = vld [vmem:[%s172 + $0xa0] sm:$0xff]
      %v208 = vld [vmem:[%s172 + $0xa8] sm:$0xff]
      %v209 = vld [vmem:[%s172 + $0xb0] sm:$0xff]
      %v210 = vld [vmem:[%s172 + $0xb8] sm:$0xff]
      %v211 = vld [vmem:[%s172 + $0xc0] sm:$0xff]
      %v212 = vld [vmem:[%s172 + $0xc8] sm:$0xff]
      %v213 = vld [vmem:[%s172 + $0xd0] sm:$0xff]
      %v214 = vld [vmem:[%s172 + $0xd8] sm:$0xff]
      %v215 = vld [vmem:[%s172 + $0xe0] sm:$0xff]
      %v216 = vld [vmem:[%s172 + $0xe8] sm:$0xff]
      %v217 = vld [vmem:[%s172 + $0xf0] sm:$0xff]
      %v218 = vld [vmem:[%s172 + $0xf8] sm:$0xff]
      %v219 = vld [vmem:[%s177] sm:$0xff]
      %v220 = vld [vmem:[%s177 + $0x8] sm:$0xff]
      %v221 = vld [vmem:[%s177 + $0x10] sm:$0xff]
      %v222 = vld [vmem:[%s177 + $0x18] sm:$0xff]
      %v223 = vld [vmem:[%s177 + $0x20] sm:$0xff]
      %v224 = vld [vmem:[%s177 + $0x28] sm:$0xff]
      %v225 = vld [vmem:[%s177 + $0x30] sm:$0xff]
      %v226 = vld [vmem:[%s177 + $0x38] sm:$0xff]
      %v227 = vld [vmem:[%s177 + $0x40] sm:$0xff]
      %v228 = vld [vmem:[%s177 + $0x48] sm:$0xff]
      %v229 = vld [vmem:[%s177 + $0x50] sm:$0xff]
      %v230 = vld [vmem:[%s177 + $0x58] sm:$0xff]
      %v231 = vld [vmem:[%s177 + $0x60] sm:$0xff]
      %v232 = vld [vmem:[%s177 + $0x68] sm:$0xff]
      %v233 = vld [vmem:[%s177 + $0x70] sm:$0xff]
      %v234 = vld [vmem:[%s177 + $0x78] sm:$0xff]
      %v235 = vld [vmem:[%s177 + $0x80] sm:$0xff]
      %v236 = vld [vmem:[%s177 + $0x88] sm:$0xff]
      %v237 = vld [vmem:[%s177 + $0x90] sm:$0xff]
      %v238 = vld [vmem:[%s177 + $0x98] sm:$0xff]
      %v239 = vld [vmem:[%s177 + $0xa0] sm:$0xff]
      %v240 = vld [vmem:[%s177 + $0xa8] sm:$0xff]
      %v241 = vld [vmem:[%s177 + $0xb0] sm:$0xff]
      %v242 = vld [vmem:[%s177 + $0xb8] sm:$0xff]
      %v243 = vld [vmem:[%s177 + $0xc0] sm:$0xff]
      %v244 = vld [vmem:[%s177 + $0xc8] sm:$0xff]
      %v245 = vld [vmem:[%s177 + $0xd0] sm:$0xff]
      %v246 = vld [vmem:[%s177 + $0xd8] sm:$0xff]
      %v247 = vld [vmem:[%s177 + $0xe0] sm:$0xff]
      %v248 = vld [vmem:[%s177 + $0xe8] sm:$0xff]
      %v249 = vld [vmem:[%s177 + $0xf0] sm:$0xff]
      %v250 = vld [vmem:[%s177 + $0xf8] sm:$0xff]
      %251 = vmatprep.subr.mxu0 0.0
      %252 = vmatpush1.msra.mxu0 %v234
      %253 = vmatprep.subr.mxu0 0.0
      %254 = vmatpush1.msra.mxu0 %v233
      %255 = vmatprep.subr.mxu0 0.0
      %256 = vmatpush1.msra.mxu0 %v232
      %257 = vmatprep.subr.mxu0 0.0
      %258 = vmatpush1.msra.mxu0 %v231
      %259 = vmatprep.subr.mxu0 0.0
      %260 = vmatpush1.msra.mxu0 %v230
      %261 = vmatprep.subr.mxu0 0.0
      %262 = vmatpush1.msra.mxu0 %v229
      %263 = vmatprep.subr.mxu0 0.0
      %264 = vmatpush1.msra.mxu0 %v228
      %265 = vmatprep.subr.mxu0 0.0
      %266 = vmatpush1.msra.mxu0 %v227
      %267 = vmatprep.subr.mxu0 0.0
      %268 = vmatpush1.msra.mxu0 %v226
      %269 = vmatprep.subr.mxu0 0.0
      %270 = vmatpush1.msra.mxu0 %v225
      %271 = vmatprep.subr.mxu0 0.0
      %272 = vmatpush1.msra.mxu0 %v224
      %273 = vmatprep.subr.mxu0 0.0
      %274 = vmatpush1.msra.mxu0 %v223
      %275 = vmatprep.subr.mxu0 0.0
      %276 = vmatpush1.msra.mxu0 %v222
      %277 = vmatprep.subr.mxu0 0.0
      %278 = vmatpush1.msra.mxu0 %v221
      %279 = vmatprep.subr.mxu0 0.0
      %280 = vmatpush1.msra.mxu0 %v220
      %281 = vmatprep.subr.mxu0 0.0
      %282 = vmatpush1.msra.mxu0 %v219
      %283 = vmatprep.subr.mxu0 0.0
      %284 = vmatpush2.msra.mxu0 %v250
      %285 = vmatprep.subr.mxu0 0.0
      %286 = vmatpush2.msra.mxu0 %v249
      %287 = vmatprep.subr.mxu0 0.0
      %288 = vmatpush2.msra.mxu0 %v248
      %289 = vmatprep.subr.mxu0 0.0
      %290 = vmatpush2.msra.mxu0 %v247
      %291 = vmatprep.subr.mxu0 0.0
      %292 = vmatpush2.msra.mxu0 %v246
      %293 = vmatprep.subr.mxu0 0.0
      %294 = vmatpush2.msra.mxu0 %v245
      %295 = vmatprep.subr.mxu0 0.0
      %296 = vmatpush2.msra.mxu0 %v244
      %297 = vmatprep.subr.mxu0 0.0
      %298 = vmatpush2.msra.mxu0 %v243
      %299 = vmatprep.subr.mxu0 0.0
      %300 = vmatpush2.msra.mxu0 %v242
      %301 = vmatprep.subr.mxu0 0.0
      %302 = vmatpush2.msra.mxu0 %v241
      %303 = vmatprep.subr.mxu0 0.0
      %304 = vmatpush2.msra.mxu0 %v240
      %305 = vmatprep.subr.mxu0 0.0
      %306 = vmatpush2.msra.mxu0 %v239
      %307 = vmatprep.subr.mxu0 0.0
      %308 = vmatpush2.msra.mxu0 %v238
      %309 = vmatprep.subr.mxu0 0.0
      %310 = vmatpush2.msra.mxu0 %v237
      %311 = vmatprep.subr.mxu0 0.0
      %312 = vmatpush2.msra.mxu0 %v236
      %313 = vmatprep.subr.mxu0 0.0
      %314 = vmatpush2.msra.mxu0 %v235
      %315 = vmatprep.mubr.f32.mxu0 %v188
      %316 = vmatmul.mubr.f32.gmra.mxu0 %v187
      %v317 = vpop.f32.mrf.mxu0
      %v318 = vadd.f32 0.0, %v317
      %v319 = vpop.f32.mrf.mxu0
      %320 = vmatprep.mubr.f32.mxu0 %v190
      %321 = vmatmul.mubr.f32.gmra.mxu0 %v189
      %v322 = vpop.f32.mrf.mxu0
      %v323 = vadd.f32 0.0, %v322
      %v324 = vpop.f32.mrf.mxu0
      %325 = vmatprep.mubr.f32.mxu0 %v192
      %326 = vmatmul.mubr.f32.gmra.mxu0 %v191
      %v327 = vpop.f32.mrf.mxu0
      %v328 = vadd.f32 0.0, %v327
      %v329 = vpop.f32.mrf.mxu0
      %330 = vmatprep.mubr.f32.mxu0 %v194
      %331 = vmatmul.mubr.f32.gmra.mxu0 %v193
      %v332 = vpop.f32.mrf.mxu0
      %v333 = vadd.f32 0.0, %v332
      %v334 = vpop.f32.mrf.mxu0
      %335 = vmatprep.mubr.f32.mxu0 %v196
      %336 = vmatmul.mubr.f32.gmra.mxu0 %v195
      %v337 = vpop.f32.mrf.mxu0
      %v338 = vadd.f32 0.0, %v337
      %v339 = vpop.f32.mrf.mxu0
      %340 = vmatprep.mubr.f32.mxu0 %v198
      %341 = vmatmul.mubr.f32.gmra.mxu0 %v197
      %v342 = vpop.f32.mrf.mxu0
      %v343 = vadd.f32 0.0, %v342
      %v344 = vpop.f32.mrf.mxu0
      %345 = vmatprep.mubr.f32.mxu0 %v200
      %346 = vmatmul.mubr.f32.gmra.mxu0 %v199
      %v347 = vpop.f32.mrf.mxu0
      %v348 = vadd.f32 0.0, %v347
      %v349 = vpop.f32.mrf.mxu0
      %350 = vmatprep.mubr.f32.mxu0 %v202
      %351 = vmatmul.mubr.f32.gmra.mxu0 %v201
      %v352 = vpop.f32.mrf.mxu0
      %v353 = vadd.f32 0.0, %v352
      %v354 = vpop.f32.mrf.mxu0
      %355 = vmatprep.mubr.f32.mxu0 %v204
      %356 = vmatmul.mubr.f32.gmra.mxu0 %v203
      %v357 = vpop.f32.mrf.mxu0
      %v358 = vadd.f32 0.0, %v357
      %v359 = vpop.f32.mrf.mxu0
      %360 = vmatprep.mubr.f32.mxu0 %v206
      %361 = vmatmul.mubr.f32.gmra.mxu0 %v205
      %v362 = vpop.f32.mrf.mxu0
      %v363 = vadd.f32 0.0, %v362
      %v364 = vpop.f32.mrf.mxu0
      %365 = vmatprep.mubr.f32.mxu0 %v208
      %366 = vmatmul.mubr.f32.gmra.mxu0 %v207
      %v367 = vpop.f32.mrf.mxu0
      %v368 = vadd.f32 0.0, %v367
      %v369 = vpop.f32.mrf.mxu0
      %370 = vmatprep.mubr.f32.mxu0 %v210
      %371 = vmatmul.mubr.f32.gmra.mxu0 %v209
      %v372 = vpop.f32.mrf.mxu0
      %v373 = vadd.f32 0.0, %v372
      %v374 = vpop.f32.mrf.mxu0
      %375 = vmatprep.mubr.f32.mxu0 %v212
      %376 = vmatmul.mubr.f32.gmra.mxu0 %v211
      %v377 = vpop.f32.mrf.mxu0
      %v378 = vadd.f32 0.0, %v377
      %v379 = vpop.f32.mrf.mxu0
      %380 = vmatprep.mubr.f32.mxu0 %v214
      %381 = vmatmul.mubr.f32.gmra.mxu0 %v213
      %v382 = vpop.f32.mrf.mxu0
      %v383 = vadd.f32 0.0, %v382
      %v384 = vpop.f32.mrf.mxu0
      %385 = vmatprep.mubr.f32.mxu0 %v216
      %386 = vmatmul.mubr.f32.gmra.mxu0 %v215
      %v387 = vpop.f32.mrf.mxu0
      %v388 = vadd.f32 0.0, %v387
      %v389 = vpop.f32.mrf.mxu0
      %390 = vmatprep.mubr.f32.mxu0 %v218
      %391 = vmatmul.mubr.f32.gmra.mxu0 %v217
      %v392 = vpop.f32.mrf.mxu0
      %v393 = vadd.f32 0.0, %v392
      %v394 = vpop.f32.mrf.mxu0
      %395 = vdwg.mxu0
      %396 = vst [vmem:[%s185] sm:$0xff] %v318
      %397 = vst [vmem:[%s185 + $0x8] sm:$0xff] %v323
      %398 = vst [vmem:[%s185 + $0x10] sm:$0xff] %v328
      %399 = vst [vmem:[%s185 + $0x18] sm:$0xff] %v333
      %400 = vst [vmem:[%s185 + $0x20] sm:$0xff] %v338
      %401 = vst [vmem:[%s185 + $0x28] sm:$0xff] %v343
      %402 = vst [vmem:[%s185 + $0x30] sm:$0xff] %v348
      %403 = vst [vmem:[%s185 + $0x38] sm:$0xff] %v353
      %404 = vst [vmem:[%s185 + $0x40] sm:$0xff] %v358
      %405 = vst [vmem:[%s185 + $0x48] sm:$0xff] %v363
      %406 = vst [vmem:[%s185 + $0x50] sm:$0xff] %v368
      %407 = vst [vmem:[%s185 + $0x58] sm:$0xff] %v373
      %408 = vst [vmem:[%s185 + $0x60] sm:$0xff] %v378
      %409 = vst [vmem:[%s185 + $0x68] sm:$0xff] %v383
      %410 = vst [vmem:[%s185 + $0x70] sm:$0xff] %v388
      %411 = vst [vmem:[%s185 + $0x78] sm:$0xff] %v393
      %s412 = smul.u32 16, %s17
      %p413 = scmp.lt.s32.totalorder %s412, 31
      %s414 = scalar_select %p413, %s412, 31
      %p415 = scmp.lt.s32.totalorder %s18, 0
      %s416 = scalar_select %p415, %s18, 0
      %s417 = sadd.s32 %s416, %s414
      %s418 = smul.addr %s417, 8
      %s419 = scalar_lea.vmem %s2, %s418
      // Predicated region
      $region29: #{igae_decoder_forward.11} parent=27 // pred_check
        %p420 = pneg %p97
      $region30: #{igae_decoder_forward.11} parent=27 // pred_check_branch
        %422 = sbr.rel (%p420) target = $region32
      $region31: #{igae_decoder_forward.11} parent=27 // pred_region
        %s423 = smul.u32 16, %s17
      $region32: #{igae_decoder_forward.11} parent=27 // pred_fallthru
        _
    $region28: #{igae_decoder_forward.11} parent=5 // pred_fallthru
      _
    %p424 = scmp.le.s32.totalorder 2, %s8
    // Predicated region
    $region33: #{igae_decoder_forward.11} parent=5 // pred_check
      %p425 = pneg %p424
    $region34: #{igae_decoder_forward.11} parent=5 // pred_check_branch
      %427 = sbr.rel (%p425) target = $region36
    $region35: #{igae_decoder_forward.11} parent=5 // pred_region
      %s428 = ssub.s32 %s8, 2
      // Predicated region
      $region37: #{igae_decoder_forward.11} parent=35 // pred_check
        %p429 = pneg %p103
      $region38: #{igae_decoder_forward.11} parent=35 // pred_check_branch
        %431 = sbr.rel (%p429) target = $region40
      $region39: #{igae_decoder_forward.11} parent=35 // pred_region
        %s432 = smul.u32 16, %s19
        %p433 = scmp.lt.s32.totalorder %s432, 31
        %s434 = scalar_select %p433, %s432, 31
        %p435 = scmp.lt.s32.totalorder %s20, 0
        %s436 = scalar_select %p435, %s20, 0
        %s437 = sadd.s32 %s436, %s434
        %s438 = smul.addr %s437, 8
        %s439 = scalar_lea.vmem %s2, %s438
      $region40: #{igae_decoder_forward.11} parent=35 // pred_fallthru
        _
    $region36: #{igae_decoder_forward.11} parent=5 // pred_fallthru
      _
  $region6: #{igae_decoder_forward.11} parent=0 // loop_footer
    %s12 = sadd.s32 1, %s8
  $region7: #{igae_decoder_forward.11} parent=0 // loop_footer_branch
    %7 = sbr.rel target = $region3
  $region8: #{igae_decoder_forward.11} parent=0 // loop_exit
    _

// kernel: igae_decoder_forward.16
$region0: #{igae_decoder_forward.16}
  #allocation0 [shape = 'u32[]', space=smem, size = 0x4, offset = 0x4, fixed_abs, tag = 'smem constant byte address 0x4 - core index']
  #allocation1 [shape = 'u32[144,128]{1,0:T(1,128)}', space=vmem, size = 0x12000, scoped, tag = 'internal scratch']
  %s0 = inlined_call_operand.vmem [shape: f32[256,128], index: 0, kind: input, shape index: {}]
  %s1 = inlined_call_operand.vmem [shape: f32[128,256], index: 1, kind: input, shape index: {}]
  %s2 = inlined_call_operand.vmem [shape: f32[256,256], index: 2, kind: output, shape index: {}]
  %s3 = sld [smem:[#allocation0]]
  $region41: #{igae_decoder_forward.16} parent=0
    _
  %s5 = ssub.s32 1, %s3
  %s6 = scalar_select 0, %s5, %s3
  loop: start=0, step=1, limit=4
  $region2: #{igae_decoder_forward.16} parent=0 // loop_pre_header
    _
  $region3: #{igae_decoder_forward.16} parent=0 // loop_header
    %s8 = sphi 0, %s12
    %p9 = scmp.ge.s32.totalorder %s8, 4
    %s15 = sphi 0, %s27
    %s16 = sphi 0, %s23
    %s17 = sphi 0, %s15
    %s18 = sphi 0, %s16
    %s19 = sphi 0, %s17
    %s20 = sphi 0, %s18
    %s30 = sphi 0, %s32
    %s33 = sphi 0, %s30
    %s34 = sphi 0, %s33
    %s50 = sphi 0, %s34
    %s56 = sphi 0, %s58
    %s59 = sphi 0, %s56
    %s60 = sphi 0, %s59
    %s76 = sphi 0, %s60
    %s84 = sphi 0, %s86
    %s87 = sphi 0, %s84
    %s88 = sphi 0, %s87
    %s104 = sphi 0, %s88
  $region4: #{igae_decoder_forward.16} parent=0 // loop_header_branch
    %11 = sbr.rel (%p9) target = $region8
  $region5: #{igae_decoder_forward.16} parent=0 // loop_body
    %s13 = ssub.s32 %s8, 1
    %s14 = ssub.s32 %s8, 2
    %s21 = sadd.s32 1, %s16
    %p22 = scmp.ge.s32.totalorder %s21, 1
    %s23 = scalar_select %p22, 0, %s21
    %s24 = sadd.s32 1, %s15
    %s25 = scalar_select %p22, %s24, %s15
    %p26 = scmp.ge.s32.totalorder %s25, 2
    %s27 = scalar_select %p26, 0, %s25
    %s28 = ssub.s32 %s15, %s27
    %p29 = scmp.eq.s32.totalorder %s28, 0
    %s31 = sadd.s32 %s30, 1
    %s32 = scalar_select %p29, %s30, %s31
    %p35 = pneg %p29
    %p36 = scmp.eq.s32.totalorder %s8, 1
    %p37 = por %p35, %p36
    %p38 = scmp.ne.s32.totalorder %s30, %s33
    %p39 = scmp.eq.s32.totalorder %s8, 0
    %p40 = por %p38, %p39
    %p41 = scmp.ne.s32.totalorder %s30, %s33
    %p42 = scmp.eq.s32.totalorder %s13, 1
    %p43 = por %p41, %p42
    %p44 = scmp.ne.s32.totalorder %s33, %s34
    %p45 = scmp.eq.s32.totalorder %s13, 0
    %p46 = por %p44, %p45
    %p47 = scmp.ne.s32.totalorder %s33, %s34
    %p48 = scmp.eq.s32.totalorder %s14, 1
    %p49 = por %p47, %p48
    %p51 = scmp.ne.s32.totalorder %s34, %s50
    %p52 = scmp.eq.s32.totalorder %s14, 0
    %p53 = por %p51, %p52
    %s54 = ssub.s32 %s16, %s23
    %p55 = scmp.eq.s32.totalorder %s54, 0
    %s57 = sadd.s32 %s56, 1
    %s58 = scalar_select %p55, %s56, %s57
    %p61 = pneg %p55
    %p62 = scmp.eq.s32.totalorder %s8, 1
    %p63 = por %p61, %p62
    %p64 = scmp.ne.s32.totalorder %s56, %s59
    %p65 = scmp.eq.s32.totalorder %s8, 0
    %p66 = por %p64, %p65
    %p67 = scmp.ne.s32.totalorder %s56, %s59
    %p68 = scmp.eq.s32.totalorder %s13, 1
    %p69 = por %p67, %p68
    %p70 = scmp.ne.s32.totalorder %s59, %s60
    %p71 = scmp.eq.s32.totalorder %s13, 0
    %p72 = por %p70, %p71
    %p73 = scmp.ne.s32.totalorder %s59, %s60
    %p74 = scmp.eq.s32.totalorder %s14, 1
    %p75 = por %p73, %p74
    %p77 = scmp.ne.s32.totalorder %s60, %s76
    %p78 = scmp.eq.s32.totalorder %s14, 0
    %p79 = por %p77, %p78
    %s80 = ssub.s32 %s15, %s27
    %s81 = ssub.s32 %s16, %s23
    %s82 = sor.u32 %s80, %s81
    %p83 = scmp.eq.s32.totalorder %s82, 0
    %s85 = sadd.s32 %s84, 1
    %s86 = scalar_select %p83, %s84, %s85
    %p89 = pneg %p83
    %p90 = scmp.eq.s32.totalorder %s8, 1
    %p91 = por %p89, %p90
    %p92 = scmp.ne.s32.totalorder %s84, %s87
    %p93 = scmp.eq.s32.totalorder %s8, 0
    %p94 = por %p92, %p93
    %p95 = scmp.ne.s32.totalorder %s84, %s87
    %p96 = scmp.eq.s32.totalorder %s13, 1
    %p97 = por %p95, %p96
    %p98 = scmp.ne.s32.totalorder %s87, %s88
    %p99 = scmp.eq.s32.totalorder %s13, 0
    %p100 = por %p98, %p99
    %p101 = scmp.ne.s32.totalorder %s87, %s88
    %p102 = scmp.eq.s32.totalorder %s14, 1
    %p103 = por %p101, %p102
    %p105 = scmp.ne.s32.totalorder %s88, %s104
    %p106 = scmp.eq.s32.totalorder %s14, 0
    %p107 = por %p105, %p106
    %p108 = scmp.le.s32.totalorder 1, %s8
    %p109 = scmp.lt.s32.totalorder %s8, 3
    %p110 = pnand %p108, %p109
    %p111 = pneg %p110
    // Predicated region
    $region9: #{igae_decoder_forward.16} parent=5 // pred_check
      _
    $region10: #{igae_decoder_forward.16} parent=5 // pred_check_branch
      %113 = sbr.rel (%p110) target = $region12
    $region11: #{igae_decoder_forward.16} parent=5 // pred_region
      %s114 = ssub.s32 %s8, 1
      // Predicated region
      $region13: #{igae_decoder_forward.16} parent=11 // pred_check
        %p115 = pneg %p72
      $region14: #{igae_decoder_forward.16} parent=11 // pred_check_branch
        %117 = sbr.rel (%p115) target = $region16
      $region15: #{igae_decoder_forward.16} parent=11 // pred_region
        %s118 = smul.u32 2, %s18
        %p119 = scmp.lt.s32.totalorder %s118, 1
        %s120 = scalar_select %p119, %s118, 1
        %s121 = smul.addr %s120, 8
        %s122 = scalar_lea.vmem %s1, %s121
        %s123 = smul.u32 2, %s18
      $region16: #{igae_decoder_forward.16} parent=11 // pred_fallthru
        _
    $region12: #{igae_decoder_forward.16} parent=5 // pred_fallthru
      _
    %p124 = scmp.lt.s32.totalorder %s8, 2
    // Predicated region
    $region17: #{igae_decoder_forward.16} parent=5 // pred_check
      %p125 = pneg %p124
    $region18: #{igae_decoder_forward.16} parent=5 // pred_check_branch
      %127 = sbr.rel (%p125) target = $region20
    $region19: #{igae_decoder_forward.16} parent=5 // pred_region
      // Predicated region
      $region21: #{igae_decoder_forward.16} parent=19 // pred_check
        %p128 = pneg %p40
      $region22: #{igae_decoder_forward.16} parent=19 // pred_check_branch
        %130 = sbr.rel (%p128) target = $region24
      $region23: #{igae_decoder_forward.16} parent=19 // pred_region
        %s131 = smul.u32 16, %s15
        %p132 = scmp.lt.s32.totalorder %s131, 31
        %s133 = scalar_select %p132, %s131, 31
        %s134 = smul.addr %s133, 8
        %s135 = scalar_lea.vmem %s0, %s134
        %s136 = smul.u32 16, %s15
      $region24: #{igae_decoder_forward.16} parent=19 // pred_fallthru
        _
    $region20: #{igae_decoder_forward.16} parent=5 // pred_fallthru
      _
    %p137 = scmp.le.s32.totalorder 1, %s8
    %p138 = scmp.lt.s32.totalorder %s8, 3
    %p139 = pnand %p137, %p138
    %p140 = pneg %p139
    // Predicated region
    $region25: #{igae_decoder_forward.16} parent=5 // pred_check
      _
    $region26: #{igae_decoder_forward.16} parent=5 // pred_check_branch
      %142 = sbr.rel (%p139) target = $region28
    $region27: #{igae_decoder_forward.16} parent=5 // pred_region
      %s143 = ssub.s32 %s8, 1
      %s144 = smul.u32 16, %s17
      %p145 = scmp.lt.s32.totalorder %s144, 31
      %s146 = scalar_select %p145, %s144, 31
      %s147 = smul.addr %s146, 8
      %s148 = scalar_lea.vmem %s0, %s147
      %p149 = pneg %p46
      %p150 = pneg %p43
      %s151 = smul.u32 2, %s18
      %p152 = scmp.lt.s32.totalorder %s151, 1
      %s153 = scalar_select %p152, %s151, 1
      %s154 = smul.addr %s153, 8
      %s155 = scalar_lea.vmem %s1, %s154
      %p156 = pneg %p72
      %p157 = pneg %p69
      %p158 = pneg %p100
      %p159 = pneg %p97
      %s160 = smul.u32 16, %s17
      %s161 = smul.u32 2, %s18
      %p162 = scmp.lt.s32.totalorder %s160, 31
      %s163 = scalar_select %p162, %s160, 31
      %p164 = scmp.lt.s32.totalorder %s161, 1
      %s165 = scalar_select %p164, %s161, 1
      %s166 = smul.addr %s163, 2
      %s167 = sadd.s32 %s165, %s166
      %s168 = smul.addr %s167, 8
      %s169 = scalar_lea.vmem %s2, %s168
      %s170 = smul.u32 16, %s17
      %p171 = scmp.lt.s32.totalorder %s170, 31
      %s172 = scalar_select %p171, %s170, 31
      %s173 = smul.addr %s172, 8
      %s174 = scalar_lea.vmem %s0, %s173
      %s175 = smul.u32 16, %s17
      %s176 = smul.u32 2, %s18
      %p177 = scmp.lt.s32.totalorder %s176, 1
      %s178 = scalar_select %p177, %s176, 1
      %s179 = smul.addr %s178, 8
      %s180 = scalar_lea.vmem %s1, %s179
      %s181 = smul.u32 2, %s18
      %s182 = smul.u32 16, %s17
      %s183 = smul.u32 2, %s18
      %p184 = scmp.lt.s32.totalorder %s182, 31
      %s185 = scalar_select %p184, %s182, 31
      %p186 = scmp.lt.s32.totalorder %s183, 1
      %s187 = scalar_select %p186, %s183, 1
      %s188 = smul.addr %s185, 2
      %s189 = sadd.s32 %s187, %s188
      %s190 = smul.addr %s189, 8
      %s191 = scalar_lea.vmem %s2, %s190
      %s192 = smul.u32 16, %s17
      %s193 = smul.u32 2, %s18
      %v194 = vld [vmem:[%s174] sm:$0xff]
      %v195 = vld [vmem:[%s174 + $0x8] sm:$0xff]
      %v196 = vld [vmem:[%s174 + $0x10] sm:$0xff]
      %v197 = vld [vmem:[%s174 + $0x18] sm:$0xff]
      %v198 = vld [vmem:[%s174 + $0x20] sm:$0xff]
      %v199 = vld [vmem:[%s174 + $0x28] sm:$0xff]
      %v200 = vld [vmem:[%s174 + $0x30] sm:$0xff]
      %v201 = vld [vmem:[%s174 + $0x38] sm:$0xff]
      %v202 = vld [vmem:[%s174 + $0x40] sm:$0xff]
      %v203 = vld [vmem:[%s174 + $0x48] sm:$0xff]
      %v204 = vld [vmem:[%s174 + $0x50] sm:$0xff]
      %v205 = vld [vmem:[%s174 + $0x58] sm:$0xff]
      %v206 = vld [vmem:[%s174 + $0x60] sm:$0xff]
      %v207 = vld [vmem:[%s174 + $0x68] sm:$0xff]
      %v208 = vld [vmem:[%s174 + $0x70] sm:$0xff]
      %v209 = vld [vmem:[%s174 + $0x78] sm:$0xff]
      %v210 = vld [vmem:[%s180] sm:$0xff]
      %v211 = vld [vmem:[%s180 + $0x8] sm:$0xff]
      %v212 = vld [vmem:[%s180 + $0x10] sm:$0xff]
      %v213 = vld [vmem:[%s180 + $0x18] sm:$0xff]
      %v214 = vld [vmem:[%s180 + $0x20] sm:$0xff]
      %v215 = vld [vmem:[%s180 + $0x28] sm:$0xff]
      %v216 = vld [vmem:[%s180 + $0x30] sm:$0xff]
      %v217 = vld [vmem:[%s180 + $0x38] sm:$0xff]
      %v218 = vld [vmem:[%s180 + $0x40] sm:$0xff]
      %v219 = vld [vmem:[%s180 + $0x48] sm:$0xff]
      %v220 = vld [vmem:[%s180 + $0x50] sm:$0xff]
      %v221 = vld [vmem:[%s180 + $0x58] sm:$0xff]
      %v222 = vld [vmem:[%s180 + $0x60] sm:$0xff]
      %v223 = vld [vmem:[%s180 + $0x68] sm:$0xff]
      %v224 = vld [vmem:[%s180 + $0x70] sm:$0xff]
      %v225 = vld [vmem:[%s180 + $0x78] sm:$0xff]
      %v226 = vld [vmem:[%s180 + $0x80] sm:$0xff]
      %v227 = vld [vmem:[%s180 + $0x88] sm:$0xff]
      %v228 = vld [vmem:[%s180 + $0x90] sm:$0xff]
      %v229 = vld [vmem:[%s180 + $0x98] sm:$0xff]
      %v230 = vld [vmem:[%s180 + $0xa0] sm:$0xff]
      %v231 = vld [vmem:[%s180 + $0xa8] sm:$0xff]
      %v232 = vld [vmem:[%s180 + $0xb0] sm:$0xff]
      %v233 = vld [vmem:[%s180 + $0xb8] sm:$0xff]
      %v234 = vld [vmem:[%s180 + $0xc0] sm:$0xff]
      %v235 = vld [vmem:[%s180 + $0xc8] sm:$0xff]
      %v236 = vld [vmem:[%s180 + $0xd0] sm:$0xff]
      %v237 = vld [vmem:[%s180 + $0xd8] sm:$0xff]
      %v238 = vld [vmem:[%s180 + $0xe0] sm:$0xff]
      %v239 = vld [vmem:[%s180 + $0xe8] sm:$0xff]
      %v240 = vld [vmem:[%s180 + $0xf0] sm:$0xff]
      %v241 = vld [vmem:[%s180 + $0xf8] sm:$0xff]
      %242 = vmatprep.subr.mxu0 %v241
      %243 = vmatpush1.msra.mxu0 %v240
      %244 = vmatprep.subr.mxu0 %v239
      %245 = vmatpush1.msra.mxu0 %v238
      %246 = vmatprep.subr.mxu0 %v237
      %247 = vmatpush1.msra.mxu0 %v236
      %248 = vmatprep.subr.mxu0 %v235
      %249 = vmatpush1.msra.mxu0 %v234
      %250 = vmatprep.subr.mxu0 %v233
      %251 = vmatpush1.msra.mxu0 %v232
      %252 = vmatprep.subr.mxu0 %v231
      %253 = vmatpush1.msra.mxu0 %v230
      %254 = vmatprep.subr.mxu0 %v229
      %255 = vmatpush1.msra.mxu0 %v228
      %256 = vmatprep.subr.mxu0 %v227
      %257 = vmatpush1.msra.mxu0 %v226
      %258 = vmatprep.subr.mxu0 %v225
      %259 = vmatpush1.msra.mxu0 %v224
      %260 = vmatprep.subr.mxu0 %v223
      %261 = vmatpush1.msra.mxu0 %v222
      %262 = vmatprep.subr.mxu0 %v221
      %263 = vmatpush1.msra.mxu0 %v220
      %264 = vmatprep.subr.mxu0 %v219
      %265 = vmatpush1.msra.mxu0 %v218
      %266 = vmatprep.subr.mxu0 %v217
      %267 = vmatpush1.msra.mxu0 %v216
      %268 = vmatprep.subr.mxu0 %v215
      %269 = vmatpush1.msra.mxu0 %v214
      %270 = vmatprep.subr.mxu0 %v213
      %271 = vmatpush1.msra.mxu0 %v212
      %272 = vmatprep.subr.mxu0 %v211
      %273 = vmatpush1.msra.mxu0 %v210
      %274 = vmatprep.subr.mxu0 0.0
      %275 = vmatpush2.msra.mxu0 0.0
      %276 = vmatprep.subr.mxu0 0.0
      %277 = vmatpush2.msra.mxu0 0.0
      %278 = vmatprep.subr.mxu0 0.0
      %279 = vmatpush2.msra.mxu0 0.0
      %280 = vmatprep.subr.mxu0 0.0
      %281 = vmatpush2.msra.mxu0 0.0
      %282 = vmatprep.subr.mxu0 0.0
      %283 = vmatpush2.msra.mxu0 0.0
      %284 = vmatprep.subr.mxu0 0.0
      %285 = vmatpush2.msra.mxu0 0.0
      %286 = vmatprep.subr.mxu0 0.0
      %287 = vmatpush2.msra.mxu0 0.0
      %288 = vmatprep.subr.mxu0 0.0
      %289 = vmatpush2.msra.mxu0 0.0
      %290 = vmatprep.subr.mxu0 0.0
      %291 = vmatpush2.msra.mxu0 0.0
      %292 = vmatprep.subr.mxu0 0.0
      %293 = vmatpush2.msra.mxu0 0.0
      %294 = vmatprep.subr.mxu0 0.0
      %295 = vmatpush2.msra.mxu0 0.0
      %296 = vmatprep.subr.mxu0 0.0
      %297 = vmatpush2.msra.mxu0 0.0
      %298 = vmatprep.subr.mxu0 0.0
      %299 = vmatpush2.msra.mxu0 0.0
      %300 = vmatprep.subr.mxu0 0.0
      %301 = vmatpush2.msra.mxu0 0.0
      %302 = vmatprep.subr.mxu0 0.0
      %303 = vmatpush2.msra.mxu0 0.0
      %304 = vmatprep.subr.mxu0 0.0
      %305 = vmatpush2.msra.mxu0 0.0
      %306 = vmatprep.mubr.f32.mxu0 0.0
      %307 = vmatmul.mubr.f32.gmra.mxu0 %v194
      %v308 = vpop.f32.mrf.mxu0
      %v309 = vadd.f32 0.0, %v308
      %v310 = vpop.f32.mrf.mxu0
      %v311 = vadd.f32 0.0, %v310
      %312 = vmatprep.mubr.f32.mxu0 0.0
      %313 = vmatmul.mubr.f32.gmra.mxu0 %v195
      %v314 = vpop.f32.mrf.mxu0
      %v315 = vadd.f32 0.0, %v314
      %v316 = vpop.f32.mrf.mxu0
      %v317 = vadd.f32 0.0, %v316
      %318 = vmatprep.mubr.f32.mxu0 0.0
      %319 = vmatmul.mubr.f32.gmra.mxu0 %v196
      %v320 = vpop.f32.mrf.mxu0
      %v321 = vadd.f32 0.0, %v320
      %v322 = vpop.f32.mrf.mxu0
      %v323 = vadd.f32 0.0, %v322
      %324 = vmatprep.mubr.f32.mxu0 0.0
      %325 = vmatmul.mubr.f32.gmra.mxu0 %v197
      %v326 = vpop.f32.mrf.mxu0
      %v327 = vadd.f32 0.0, %v326
      %v328 = vpop.f32.mrf.mxu0
      %v329 = vadd.f32 0.0, %v328
      %330 = vmatprep.mubr.f32.mxu0 0.0
      %331 = vmatmul.mubr.f32.gmra.mxu0 %v198
      %v332 = vpop.f32.mrf.mxu0
      %v333 = vadd.f32 0.0, %v332
      %v334 = vpop.f32.mrf.mxu0
      %v335 = vadd.f32 0.0, %v334
      %336 = vmatprep.mubr.f32.mxu0 0.0
      %337 = vmatmul.mubr.f32.gmra.mxu0 %v199
      %v338 = vpop.f32.mrf.mxu0
      %v339 = vadd.f32 0.0, %v338
      %v340 = vpop.f32.mrf.mxu0
      %v341 = vadd.f32 0.0, %v340
      %342 = vmatprep.mubr.f32.mxu0 0.0
      %343 = vmatmul.mubr.f32.gmra.mxu0 %v200
      %v344 = vpop.f32.mrf.mxu0
      %v345 = vadd.f32 0.0, %v344
      %v346 = vpop.f32.mrf.mxu0
      %v347 = vadd.f32 0.0, %v346
      %348 = vmatprep.mubr.f32.mxu0 0.0
      %349 = vmatmul.mubr.f32.gmra.mxu0 %v201
      %v350 = vpop.f32.mrf.mxu0
      %v351 = vadd.f32 0.0, %v350
      %v352 = vpop.f32.mrf.mxu0
      %v353 = vadd.f32 0.0, %v352
      %354 = vmatprep.mubr.f32.mxu0 0.0
      %355 = vmatmul.mubr.f32.gmra.mxu0 %v202
      %v356 = vpop.f32.mrf.mxu0
      %v357 = vadd.f32 0.0, %v356
      %v358 = vpop.f32.mrf.mxu0
      %v359 = vadd.f32 0.0, %v358
      %360 = vmatprep.mubr.f32.mxu0 0.0
      %361 = vmatmul.mubr.f32.gmra.mxu0 %v203
      %v362 = vpop.f32.mrf.mxu0
      %v363 = vadd.f32 0.0, %v362
      %v364 = vpop.f32.mrf.mxu0
      %v365 = vadd.f32 0.0, %v364
      %366 = vmatprep.mubr.f32.mxu0 0.0
      %367 = vmatmul.mubr.f32.gmra.mxu0 %v204
      %v368 = vpop.f32.mrf.mxu0
      %v369 = vadd.f32 0.0, %v368
      %v370 = vpop.f32.mrf.mxu0
      %v371 = vadd.f32 0.0, %v370
      %372 = vmatprep.mubr.f32.mxu0 0.0
      %373 = vmatmul.mubr.f32.gmra.mxu0 %v205
      %v374 = vpop.f32.mrf.mxu0
      %v375 = vadd.f32 0.0, %v374
      %v376 = vpop.f32.mrf.mxu0
      %v377 = vadd.f32 0.0, %v376
      %378 = vmatprep.mubr.f32.mxu0 0.0
      %379 = vmatmul.mubr.f32.gmra.mxu0 %v206
      %v380 = vpop.f32.mrf.mxu0
      %v381 = vadd.f32 0.0, %v380
      %v382 = vpop.f32.mrf.mxu0
      %v383 = vadd.f32 0.0, %v382
      %384 = vmatprep.mubr.f32.mxu0 0.0
      %385 = vmatmul.mubr.f32.gmra.mxu0 %v207
      %v386 = vpop.f32.mrf.mxu0
      %v387 = vadd.f32 0.0, %v386
      %v388 = vpop.f32.mrf.mxu0
      %v389 = vadd.f32 0.0, %v388
      %390 = vmatprep.mubr.f32.mxu0 0.0
      %391 = vmatmul.mubr.f32.gmra.mxu0 %v208
      %v392 = vpop.f32.mrf.mxu0
      %v393 = vadd.f32 0.0, %v392
      %v394 = vpop.f32.mrf.mxu0
      %v395 = vadd.f32 0.0, %v394
      %396 = vmatprep.mubr.f32.mxu0 0.0
      %397 = vmatmul.mubr.f32.gmra.mxu0 %v209
      %v398 = vpop.f32.mrf.mxu0
      %v399 = vadd.f32 0.0, %v398
      %v400 = vpop.f32.mrf.mxu0
      %v401 = vadd.f32 0.0, %v400
      %402 = vdwg.mxu0
      %v403 = vtanh.pop %v309
      %v404 = vtanh.pop %v311
      %v405 = vtanh.pop %v315
      %v406 = vtanh.pop %v317
      %v407 = vtanh.pop %v321
      %v408 = vtanh.pop %v323
      %v409 = vtanh.pop %v327
      %v410 = vtanh.pop %v329
      %v411 = vtanh.pop %v333
      %v412 = vtanh.pop %v335
      %v413 = vtanh.pop %v339
      %v414 = vtanh.pop %v341
      %v415 = vtanh.pop %v345
      %v416 = vtanh.pop %v347
      %v417 = vtanh.pop %v351
      %v418 = vtanh.pop %v353
      %v419 = vtanh.pop %v357
      %v420 = vtanh.pop %v359
      %v421 = vtanh.pop %v363
      %v422 = vtanh.pop %v365
      %v423 = vtanh.pop %v369
      %v424 = vtanh.pop %v371
      %v425 = vtanh.pop %v375
      %v426 = vtanh.pop %v377
      %v427 = vtanh.pop %v381
      %v428 = vtanh.pop %v383
      %v429 = vtanh.pop %v387
      %v430 = vtanh.pop %v389
      %v431 = vtanh.pop %v393
      %v432 = vtanh.pop %v395
      %v433 = vtanh.pop %v399
      %v434 = vtanh.pop %v401
      %435 = vst [vmem:[%s191] sm:$0xff] %v403
      %436 = vst [vmem:[%s191 + $0x8] sm:$0xff] %v404
      %437 = vst [vmem:[%s191 + $0x10] sm:$0xff] %v405
      %438 = vst [vmem:[%s191 + $0x18] sm:$0xff] %v406
      %439 = vst [vmem:[%s191 + $0x20] sm:$0xff] %v407
      %440 = vst [vmem:[%s191 + $0x28] sm:$0xff] %v408
      %441 = vst [vmem:[%s191 + $0x30] sm:$0xff] %v409
      %442 = vst [vmem:[%s191 + $0x38] sm:$0xff] %v410
      %443 = vst [vmem:[%s191 + $0x40] sm:$0xff] %v411
      %444 = vst [vmem:[%s191 + $0x48] sm:$0xff] %v412
      %445 = vst [vmem:[%s191 + $0x50] sm:$0xff] %v413
      %446 = vst [vmem:[%s191 + $0x58] sm:$0xff] %v414
      %447 = vst [vmem:[%s191 + $0x60] sm:$0xff] %v415
      %448 = vst [vmem:[%s191 + $0x68] sm:$0xff] %v416
      %449 = vst [vmem:[%s191 + $0x70] sm:$0xff] %v417
      %450 = vst [vmem:[%s191 + $0x78] sm:$0xff] %v418
      %451 = vst [vmem:[%s191 + $0x80] sm:$0xff] %v419
      %452 = vst [vmem:[%s191 + $0x88] sm:$0xff] %v420
      %453 = vst [vmem:[%s191 + $0x90] sm:$0xff] %v421
      %454 = vst [vmem:[%s191 + $0x98] sm:$0xff] %v422
      %455 = vst [vmem:[%s191 + $0xa0] sm:$0xff] %v423
      %456 = vst [vmem:[%s191 + $0xa8] sm:$0xff] %v424
      %457 = vst [vmem:[%s191 + $0xb0] sm:$0xff] %v425
      %458 = vst [vmem:[%s191 + $0xb8] sm:$0xff] %v426
      %459 = vst [vmem:[%s191 + $0xc0] sm:$0xff] %v427
      %460 = vst [vmem:[%s191 + $0xc8] sm:$0xff] %v428
      %461 = vst [vmem:[%s191 + $0xd0] sm:$0xff] %v429
      %462 = vst [vmem:[%s191 + $0xd8] sm:$0xff] %v430
      %463 = vst [vmem:[%s191 + $0xe0] sm:$0xff] %v431
      %464 = vst [vmem:[%s191 + $0xe8] sm:$0xff] %v432
      %465 = vst [vmem:[%s191 + $0xf0] sm:$0xff] %v433
      %466 = vst [vmem:[%s191 + $0xf8] sm:$0xff] %v434
      %s467 = smul.u32 16, %s17
      %s468 = smul.u32 2, %s18
      %p469 = scmp.lt.s32.totalorder %s467, 31
      %s470 = scalar_select %p469, %s467, 31
      %p471 = scmp.lt.s32.totalorder %s468, 1
      %s472 = scalar_select %p471, %s468, 1
      %s473 = smul.addr %s470, 2
      %s474 = sadd.s32 %s472, %s473
      %s475 = smul.addr %s474, 8
      %s476 = scalar_lea.vmem %s2, %s475
      // Predicated region
      $region29: #{igae_decoder_forward.16} parent=27 // pred_check
        %p477 = pneg %p97
      $region30: #{igae_decoder_forward.16} parent=27 // pred_check_branch
        %479 = sbr.rel (%p477) target = $region32
      $region31: #{igae_decoder_forward.16} parent=27 // pred_region
        %s480 = smul.u32 16, %s17
        %s481 = smul.u32 2, %s18
      $region32: #{igae_decoder_forward.16} parent=27 // pred_fallthru
        _
    $region28: #{igae_decoder_forward.16} parent=5 // pred_fallthru
      _
    %p482 = scmp.le.s32.totalorder 2, %s8
    // Predicated region
    $region33: #{igae_decoder_forward.16} parent=5 // pred_check
      %p483 = pneg %p482
    $region34: #{igae_decoder_forward.16} parent=5 // pred_check_branch
      %485 = sbr.rel (%p483) target = $region36
    $region35: #{igae_decoder_forward.16} parent=5 // pred_region
      %s486 = ssub.s32 %s8, 2
      // Predicated region
      $region37: #{igae_decoder_forward.16} parent=35 // pred_check
        %p487 = pneg %p103
      $region38: #{igae_decoder_forward.16} parent=35 // pred_check_branch
        %489 = sbr.rel (%p487) target = $region40
      $region39: #{igae_decoder_forward.16} parent=35 // pred_region
        %s490 = smul.u32 16, %s19
        %s491 = smul.u32 2, %s20
        %p492 = scmp.lt.s32.totalorder %s490, 31
        %s493 = scalar_select %p492, %s490, 31
        %p494 = scmp.lt.s32.totalorder %s491, 1
        %s495 = scalar_select %p494, %s491, 1
        %s496 = smul.addr %s493, 2
        %s497 = sadd.s32 %s495, %s496
        %s498 = smul.addr %s497, 8
        %s499 = scalar_lea.vmem %s2, %s498
      $region40: #{igae_decoder_forward.16} parent=35 // pred_fallthru
        _
    $region36: #{igae_decoder_forward.16} parent=5 // pred_fallthru
      _
  $region6: #{igae_decoder_forward.16} parent=0 // loop_footer
    %s12 = sadd.s32 1, %s8
  $region7: #{igae_decoder_forward.16} parent=0 // loop_footer_branch
    %7 = sbr.rel target = $region3
  $region8: #{igae_decoder_forward.16} parent=0 // loop_exit
    _

// kernel: igae_decoder_forward.17
$region0: #{igae_decoder_forward.17}
  #allocation0 [shape = 'u32[]', space=smem, size = 0x4, offset = 0x4, fixed_abs, tag = 'smem constant byte address 0x4 - core index']
  #allocation1 [shape = 'u32[144,128]{1,0:T(1,128)}', space=vmem, size = 0x12000, scoped, tag = 'internal scratch']
  %s0 = inlined_call_operand.vmem [shape: f32[256,256], index: 0, kind: input, shape index: {}]
  %s1 = inlined_call_operand.vmem [shape: f32[256,256], index: 1, kind: input, shape index: {}]
  %s2 = inlined_call_operand.vmem [shape: f32[256,256], index: 2, kind: output, shape index: {}]
  %s3 = sld [smem:[#allocation0]]
  $region41: #{igae_decoder_forward.17} parent=0
    _
  %s5 = ssub.s32 1, %s3
  %s6 = scalar_select 0, %s5, %s3
  loop: start=0, step=1, limit=4
  $region2: #{igae_decoder_forward.17} parent=0 // loop_pre_header
    _
  $region3: #{igae_decoder_forward.17} parent=0 // loop_header
    %s8 = sphi 0, %s12
    %p9 = scmp.ge.s32.totalorder %s8, 4
    %s15 = sphi 0, %s27
    %s16 = sphi 0, %s23
    %s17 = sphi 0, %s15
    %s18 = sphi 0, %s16
    %s19 = sphi 0, %s17
    %s20 = sphi 0, %s18
    %s30 = sphi 0, %s32
    %s33 = sphi 0, %s30
    %s34 = sphi 0, %s33
    %s50 = sphi 0, %s34
    %s56 = sphi 0, %s58
    %s59 = sphi 0, %s56
    %s60 = sphi 0, %s59
    %s76 = sphi 0, %s60
    %s84 = sphi 0, %s86
    %s87 = sphi 0, %s84
    %s88 = sphi 0, %s87
    %s104 = sphi 0, %s88
  $region4: #{igae_decoder_forward.17} parent=0 // loop_header_branch
    %11 = sbr.rel (%p9) target = $region8
  $region5: #{igae_decoder_forward.17} parent=0 // loop_body
    %s13 = ssub.s32 %s8, 1
    %s14 = ssub.s32 %s8, 2
    %s21 = sadd.s32 1, %s16
    %p22 = scmp.ge.s32.totalorder %s21, 1
    %s23 = scalar_select %p22, 0, %s21
    %s24 = sadd.s32 1, %s15
    %s25 = scalar_select %p22, %s24, %s15
    %p26 = scmp.ge.s32.totalorder %s25, 2
    %s27 = scalar_select %p26, 0, %s25
    %s28 = ssub.s32 %s15, %s27
    %p29 = scmp.eq.s32.totalorder %s28, 0
    %s31 = sadd.s32 %s30, 1
    %s32 = scalar_select %p29, %s30, %s31
    %p35 = pneg %p29
    %p36 = scmp.eq.s32.totalorder %s8, 1
    %p37 = por %p35, %p36
    %p38 = scmp.ne.s32.totalorder %s30, %s33
    %p39 = scmp.eq.s32.totalorder %s8, 0
    %p40 = por %p38, %p39
    %p41 = scmp.ne.s32.totalorder %s30, %s33
    %p42 = scmp.eq.s32.totalorder %s13, 1
    %p43 = por %p41, %p42
    %p44 = scmp.ne.s32.totalorder %s33, %s34
    %p45 = scmp.eq.s32.totalorder %s13, 0
    %p46 = por %p44, %p45
    %p47 = scmp.ne.s32.totalorder %s33, %s34
    %p48 = scmp.eq.s32.totalorder %s14, 1
    %p49 = por %p47, %p48
    %p51 = scmp.ne.s32.totalorder %s34, %s50
    %p52 = scmp.eq.s32.totalorder %s14, 0
    %p53 = por %p51, %p52
    %s54 = ssub.s32 %s16, %s23
    %p55 = scmp.eq.s32.totalorder %s54, 0
    %s57 = sadd.s32 %s56, 1
    %s58 = scalar_select %p55, %s56, %s57
    %p61 = pneg %p55
    %p62 = scmp.eq.s32.totalorder %s8, 1
    %p63 = por %p61, %p62
    %p64 = scmp.ne.s32.totalorder %s56, %s59
    %p65 = scmp.eq.s32.totalorder %s8, 0
    %p66 = por %p64, %p65
    %p67 = scmp.ne.s32.totalorder %s56, %s59
    %p68 = scmp.eq.s32.totalorder %s13, 1
    %p69 = por %p67, %p68
    %p70 = scmp.ne.s32.totalorder %s59, %s60
    %p71 = scmp.eq.s32.totalorder %s13, 0
    %p72 = por %p70, %p71
    %p73 = scmp.ne.s32.totalorder %s59, %s60
    %p74 = scmp.eq.s32.totalorder %s14, 1
    %p75 = por %p73, %p74
    %p77 = scmp.ne.s32.totalorder %s60, %s76
    %p78 = scmp.eq.s32.totalorder %s14, 0
    %p79 = por %p77, %p78
    %s80 = ssub.s32 %s15, %s27
    %s81 = ssub.s32 %s16, %s23
    %s82 = sor.u32 %s80, %s81
    %p83 = scmp.eq.s32.totalorder %s82, 0
    %s85 = sadd.s32 %s84, 1
    %s86 = scalar_select %p83, %s84, %s85
    %p89 = pneg %p83
    %p90 = scmp.eq.s32.totalorder %s8, 1
    %p91 = por %p89, %p90
    %p92 = scmp.ne.s32.totalorder %s84, %s87
    %p93 = scmp.eq.s32.totalorder %s8, 0
    %p94 = por %p92, %p93
    %p95 = scmp.ne.s32.totalorder %s84, %s87
    %p96 = scmp.eq.s32.totalorder %s13, 1
    %p97 = por %p95, %p96
    %p98 = scmp.ne.s32.totalorder %s87, %s88
    %p99 = scmp.eq.s32.totalorder %s13, 0
    %p100 = por %p98, %p99
    %p101 = scmp.ne.s32.totalorder %s87, %s88
    %p102 = scmp.eq.s32.totalorder %s14, 1
    %p103 = por %p101, %p102
    %p105 = scmp.ne.s32.totalorder %s88, %s104
    %p106 = scmp.eq.s32.totalorder %s14, 0
    %p107 = por %p105, %p106
    %p108 = scmp.le.s32.totalorder 1, %s8
    %p109 = scmp.lt.s32.totalorder %s8, 3
    %p110 = pnand %p108, %p109
    %p111 = pneg %p110
    // Predicated region
    $region9: #{igae_decoder_forward.17} parent=5 // pred_check
      _
    $region10: #{igae_decoder_forward.17} parent=5 // pred_check_branch
      %113 = sbr.rel (%p110) target = $region12
    $region11: #{igae_decoder_forward.17} parent=5 // pred_region
      %s114 = ssub.s32 %s8, 1
      // Predicated region
      $region13: #{igae_decoder_forward.17} parent=11 // pred_check
        %p115 = pneg %p72
      $region14: #{igae_decoder_forward.17} parent=11 // pred_check_branch
        %117 = sbr.rel (%p115) target = $region16
      $region15: #{igae_decoder_forward.17} parent=11 // pred_region
        %s118 = smul.u32 2, %s18
        %p119 = scmp.lt.s32.totalorder %s118, 1
        %s120 = scalar_select %p119, %s118, 1
        %s121 = smul.addr %s120, 8
        %s122 = scalar_lea.vmem %s1, %s121
        %s123 = smul.u32 2, %s18
      $region16: #{igae_decoder_forward.17} parent=11 // pred_fallthru
        _
    $region12: #{igae_decoder_forward.17} parent=5 // pred_fallthru
      _
    %p124 = scmp.lt.s32.totalorder %s8, 2
    // Predicated region
    $region17: #{igae_decoder_forward.17} parent=5 // pred_check
      %p125 = pneg %p124
    $region18: #{igae_decoder_forward.17} parent=5 // pred_check_branch
      %127 = sbr.rel (%p125) target = $region20
    $region19: #{igae_decoder_forward.17} parent=5 // pred_region
      // Predicated region
      $region21: #{igae_decoder_forward.17} parent=19 // pred_check
        %p128 = pneg %p40
      $region22: #{igae_decoder_forward.17} parent=19 // pred_check_branch
        %130 = sbr.rel (%p128) target = $region24
      $region23: #{igae_decoder_forward.17} parent=19 // pred_region
        %s131 = smul.u32 16, %s15
        %p132 = scmp.lt.s32.totalorder %s131, 31
        %s133 = scalar_select %p132, %s131, 31
        %s134 = smul.addr %s133, 2
        %s135 = smul.addr %s134, 8
        %s136 = scalar_lea.vmem %s0, %s135
        %s137 = smul.u32 16, %s15
      $region24: #{igae_decoder_forward.17} parent=19 // pred_fallthru
        _
    $region20: #{igae_decoder_forward.17} parent=5 // pred_fallthru
      _
    %p138 = scmp.le.s32.totalorder 1, %s8
    %p139 = scmp.lt.s32.totalorder %s8, 3
    %p140 = pnand %p138, %p139
    %p141 = pneg %p140
    // Predicated region
    $region25: #{igae_decoder_forward.17} parent=5 // pred_check
      _
    $region26: #{igae_decoder_forward.17} parent=5 // pred_check_branch
      %143 = sbr.rel (%p140) target = $region28
    $region27: #{igae_decoder_forward.17} parent=5 // pred_region
      %s144 = ssub.s32 %s8, 1
      %s145 = smul.u32 16, %s17
      %p146 = scmp.lt.s32.totalorder %s145, 31
      %s147 = scalar_select %p146, %s145, 31
      %s148 = smul.addr %s147, 2
      %s149 = smul.addr %s148, 8
      %s150 = scalar_lea.vmem %s0, %s149
      %p151 = pneg %p46
      %p152 = pneg %p43
      %s153 = smul.u32 2, %s18
      %p154 = scmp.lt.s32.totalorder %s153, 1
      %s155 = scalar_select %p154, %s153, 1
      %s156 = smul.addr %s155, 8
      %s157 = scalar_lea.vmem %s1, %s156
      %p158 = pneg %p72
      %p159 = pneg %p69
      %p160 = pneg %p100
      %p161 = pneg %p97
      %s162 = smul.u32 16, %s17
      %s163 = smul.u32 2, %s18
      %p164 = scmp.lt.s32.totalorder %s162, 31
      %s165 = scalar_select %p164, %s162, 31
      %p166 = scmp.lt.s32.totalorder %s163, 1
      %s167 = scalar_select %p166, %s163, 1
      %s168 = smul.addr %s165, 2
      %s169 = sadd.s32 %s167, %s168
      %s170 = smul.addr %s169, 8
      %s171 = scalar_lea.vmem %s2, %s170
      %s172 = smul.u32 16, %s17
      %p173 = scmp.lt.s32.totalorder %s172, 31
      %s174 = scalar_select %p173, %s172, 31
      %s175 = smul.addr %s174, 2
      %s176 = smul.addr %s175, 8
      %s177 = scalar_lea.vmem %s0, %s176
      %s178 = smul.u32 16, %s17
      %s179 = smul.u32 2, %s18
      %p180 = scmp.lt.s32.totalorder %s179, 1
      %s181 = scalar_select %p180, %s179, 1
      %s182 = smul.addr %s181, 8
      %s183 = scalar_lea.vmem %s1, %s182
      %s184 = smul.u32 2, %s18
      %s185 = smul.u32 16, %s17
      %s186 = smul.u32 2, %s18
      %p187 = scmp.lt.s32.totalorder %s185, 31
      %s188 = scalar_select %p187, %s185, 31
      %p189 = scmp.lt.s32.totalorder %s186, 1
      %s190 = scalar_select %p189, %s186, 1
      %s191 = smul.addr %s188, 2
      %s192 = sadd.s32 %s190, %s191
      %s193 = smul.addr %s192, 8
      %s194 = scalar_lea.vmem %s2, %s193
      %s195 = smul.u32 16, %s17
      %s196 = smul.u32 2, %s18
      %v197 = vld [vmem:[%s177] sm:$0xff]
      %v198 = vld [vmem:[%s177 + $0x8] sm:$0xff]
      %v199 = vld [vmem:[%s177 + $0x10] sm:$0xff]
      %v200 = vld [vmem:[%s177 + $0x18] sm:$0xff]
      %v201 = vld [vmem:[%s177 + $0x20] sm:$0xff]
      %v202 = vld [vmem:[%s177 + $0x28] sm:$0xff]
      %v203 = vld [vmem:[%s177 + $0x30] sm:$0xff]
      %v204 = vld [vmem:[%s177 + $0x38] sm:$0xff]
      %v205 = vld [vmem:[%s177 + $0x40] sm:$0xff]
      %v206 = vld [vmem:[%s177 + $0x48] sm:$0xff]
      %v207 = vld [vmem:[%s177 + $0x50] sm:$0xff]
      %v208 = vld [vmem:[%s177 + $0x58] sm:$0xff]
      %v209 = vld [vmem:[%s177 + $0x60] sm:$0xff]
      %v210 = vld [vmem:[%s177 + $0x68] sm:$0xff]
      %v211 = vld [vmem:[%s177 + $0x70] sm:$0xff]
      %v212 = vld [vmem:[%s177 + $0x78] sm:$0xff]
      %v213 = vld [vmem:[%s177 + $0x80] sm:$0xff]
      %v214 = vld [vmem:[%s177 + $0x88] sm:$0xff]
      %v215 = vld [vmem:[%s177 + $0x90] sm:$0xff]
      %v216 = vld [vmem:[%s177 + $0x98] sm:$0xff]
      %v217 = vld [vmem:[%s177 + $0xa0] sm:$0xff]
      %v218 = vld [vmem:[%s177 + $0xa8] sm:$0xff]
      %v219 = vld [vmem:[%s177 + $0xb0] sm:$0xff]
      %v220 = vld [vmem:[%s177 + $0xb8] sm:$0xff]
      %v221 = vld [vmem:[%s177 + $0xc0] sm:$0xff]
      %v222 = vld [vmem:[%s177 + $0xc8] sm:$0xff]
      %v223 = vld [vmem:[%s177 + $0xd0] sm:$0xff]
      %v224 = vld [vmem:[%s177 + $0xd8] sm:$0xff]
      %v225 = vld [vmem:[%s177 + $0xe0] sm:$0xff]
      %v226 = vld [vmem:[%s177 + $0xe8] sm:$0xff]
      %v227 = vld [vmem:[%s177 + $0xf0] sm:$0xff]
      %v228 = vld [vmem:[%s177 + $0xf8] sm:$0xff]
      %v229 = vld [vmem:[%s183] sm:$0xff]
      %v230 = vld [vmem:[%s183 + $0x8] sm:$0xff]
      %v231 = vld [vmem:[%s183 + $0x10] sm:$0xff]
      %v232 = vld [vmem:[%s183 + $0x18] sm:$0xff]
      %v233 = vld [vmem:[%s183 + $0x20] sm:$0xff]
      %v234 = vld [vmem:[%s183 + $0x28] sm:$0xff]
      %v235 = vld [vmem:[%s183 + $0x30] sm:$0xff]
      %v236 = vld [vmem:[%s183 + $0x38] sm:$0xff]
      %v237 = vld [vmem:[%s183 + $0x40] sm:$0xff]
      %v238 = vld [vmem:[%s183 + $0x48] sm:$0xff]
      %v239 = vld [vmem:[%s183 + $0x50] sm:$0xff]
      %v240 = vld [vmem:[%s183 + $0x58] sm:$0xff]
      %v241 = vld [vmem:[%s183 + $0x60] sm:$0xff]
      %v242 = vld [vmem:[%s183 + $0x68] sm:$0xff]
      %v243 = vld [vmem:[%s183 + $0x70] sm:$0xff]
      %v244 = vld [vmem:[%s183 + $0x78] sm:$0xff]
      %v245 = vld [vmem:[%s183 + $0x80] sm:$0xff]
      %v246 = vld [vmem:[%s183 + $0x88] sm:$0xff]
      %v247 = vld [vmem:[%s183 + $0x90] sm:$0xff]
      %v248 = vld [vmem:[%s183 + $0x98] sm:$0xff]
      %v249 = vld [vmem:[%s183 + $0xa0] sm:$0xff]
      %v250 = vld [vmem:[%s183 + $0xa8] sm:$0xff]
      %v251 = vld [vmem:[%s183 + $0xb0] sm:$0xff]
      %v252 = vld [vmem:[%s183 + $0xb8] sm:$0xff]
      %v253 = vld [vmem:[%s183 + $0xc0] sm:$0xff]
      %v254 = vld [vmem:[%s183 + $0xc8] sm:$0xff]
      %v255 = vld [vmem:[%s183 + $0xd0] sm:$0xff]
      %v256 = vld [vmem:[%s183 + $0xd8] sm:$0xff]
      %v257 = vld [vmem:[%s183 + $0xe0] sm:$0xff]
      %v258 = vld [vmem:[%s183 + $0xe8] sm:$0xff]
      %v259 = vld [vmem:[%s183 + $0xf0] sm:$0xff]
      %v260 = vld [vmem:[%s183 + $0xf8] sm:$0xff]
      %v261 = vld [vmem:[%s183 + $0x100] sm:$0xff]
      %v262 = vld [vmem:[%s183 + $0x108] sm:$0xff]
      %v263 = vld [vmem:[%s183 + $0x110] sm:$0xff]
      %v264 = vld [vmem:[%s183 + $0x118] sm:$0xff]
      %v265 = vld [vmem:[%s183 + $0x120] sm:$0xff]
      %v266 = vld [vmem:[%s183 + $0x128] sm:$0xff]
      %v267 = vld [vmem:[%s183 + $0x130] sm:$0xff]
      %v268 = vld [vmem:[%s183 + $0x138] sm:$0xff]
      %v269 = vld [vmem:[%s183 + $0x140] sm:$0xff]
      %v270 = vld [vmem:[%s183 + $0x148] sm:$0xff]
      %v271 = vld [vmem:[%s183 + $0x150] sm:$0xff]
      %v272 = vld [vmem:[%s183 + $0x158] sm:$0xff]
      %v273 = vld [vmem:[%s183 + $0x160] sm:$0xff]
      %v274 = vld [vmem:[%s183 + $0x168] sm:$0xff]
      %v275 = vld [vmem:[%s183 + $0x170] sm:$0xff]
      %v276 = vld [vmem:[%s183 + $0x178] sm:$0xff]
      %v277 = vld [vmem:[%s183 + $0x180] sm:$0xff]
      %v278 = vld [vmem:[%s183 + $0x188] sm:$0xff]
      %v279 = vld [vmem:[%s183 + $0x190] sm:$0xff]
      %v280 = vld [vmem:[%s183 + $0x198] sm:$0xff]
      %v281 = vld [vmem:[%s183 + $0x1a0] sm:$0xff]
      %v282 = vld [vmem:[%s183 + $0x1a8] sm:$0xff]
      %v283 = vld [vmem:[%s183 + $0x1b0] sm:$0xff]
      %v284 = vld [vmem:[%s183 + $0x1b8] sm:$0xff]
      %v285 = vld [vmem:[%s183 + $0x1c0] sm:$0xff]
      %v286 = vld [vmem:[%s183 + $0x1c8] sm:$0xff]
      %v287 = vld [vmem:[%s183 + $0x1d0] sm:$0xff]
      %v288 = vld [vmem:[%s183 + $0x1d8] sm:$0xff]
      %v289 = vld [vmem:[%s183 + $0x1e0] sm:$0xff]
      %v290 = vld [vmem:[%s183 + $0x1e8] sm:$0xff]
      %v291 = vld [vmem:[%s183 + $0x1f0] sm:$0xff]
      %v292 = vld [vmem:[%s183 + $0x1f8] sm:$0xff]
      %293 = vmatprep.subr.mxu0 %v260
      %294 = vmatpush1.msra.mxu0 %v259
      %295 = vmatprep.subr.mxu0 %v258
      %296 = vmatpush1.msra.mxu0 %v257
      %297 = vmatprep.subr.mxu0 %v256
      %298 = vmatpush1.msra.mxu0 %v255
      %299 = vmatprep.subr.mxu0 %v254
      %300 = vmatpush1.msra.mxu0 %v253
      %301 = vmatprep.subr.mxu0 %v252
      %302 = vmatpush1.msra.mxu0 %v251
      %303 = vmatprep.subr.mxu0 %v250
      %304 = vmatpush1.msra.mxu0 %v249
      %305 = vmatprep.subr.mxu0 %v248
      %306 = vmatpush1.msra.mxu0 %v247
      %307 = vmatprep.subr.mxu0 %v246
      %308 = vmatpush1.msra.mxu0 %v245
      %309 = vmatprep.subr.mxu0 %v244
      %310 = vmatpush1.msra.mxu0 %v243
      %311 = vmatprep.subr.mxu0 %v242
      %312 = vmatpush1.msra.mxu0 %v241
      %313 = vmatprep.subr.mxu0 %v240
      %314 = vmatpush1.msra.mxu0 %v239
      %315 = vmatprep.subr.mxu0 %v238
      %316 = vmatpush1.msra.mxu0 %v237
      %317 = vmatprep.subr.mxu0 %v236
      %318 = vmatpush1.msra.mxu0 %v235
      %319 = vmatprep.subr.mxu0 %v234
      %320 = vmatpush1.msra.mxu0 %v233
      %321 = vmatprep.subr.mxu0 %v232
      %322 = vmatpush1.msra.mxu0 %v231
      %323 = vmatprep.subr.mxu0 %v230
      %324 = vmatpush1.msra.mxu0 %v229
      %325 = vmatprep.subr.mxu0 %v292
      %326 = vmatpush2.msra.mxu0 %v291
      %327 = vmatprep.subr.mxu0 %v290
      %328 = vmatpush2.msra.mxu0 %v289
      %329 = vmatprep.subr.mxu0 %v288
      %330 = vmatpush2.msra.mxu0 %v287
      %331 = vmatprep.subr.mxu0 %v286
      %332 = vmatpush2.msra.mxu0 %v285
      %333 = vmatprep.subr.mxu0 %v284
      %334 = vmatpush2.msra.mxu0 %v283
      %335 = vmatprep.subr.mxu0 %v282
      %336 = vmatpush2.msra.mxu0 %v281
      %337 = vmatprep.subr.mxu0 %v280
      %338 = vmatpush2.msra.mxu0 %v279
      %339 = vmatprep.subr.mxu0 %v278
      %340 = vmatpush2.msra.mxu0 %v277
      %341 = vmatprep.subr.mxu0 %v276
      %342 = vmatpush2.msra.mxu0 %v275
      %343 = vmatprep.subr.mxu0 %v274
      %344 = vmatpush2.msra.mxu0 %v273
      %345 = vmatprep.subr.mxu0 %v272
      %346 = vmatpush2.msra.mxu0 %v271
      %347 = vmatprep.subr.mxu0 %v270
      %348 = vmatpush2.msra.mxu0 %v269
      %349 = vmatprep.subr.mxu0 %v268
      %350 = vmatpush2.msra.mxu0 %v267
      %351 = vmatprep.subr.mxu0 %v266
      %352 = vmatpush2.msra.mxu0 %v265
      %353 = vmatprep.subr.mxu0 %v264
      %354 = vmatpush2.msra.mxu0 %v263
      %355 = vmatprep.subr.mxu0 %v262
      %356 = vmatpush2.msra.mxu0 %v261
      %357 = vmatprep.mubr.f32.mxu0 %v198
      %358 = vmatmul.mubr.f32.gmra.mxu0 %v197
      %v359 = vpop.f32.mrf.mxu0
      %v360 = vadd.f32 0.0, %v359
      %v361 = vpop.f32.mrf.mxu0
      %v362 = vadd.f32 0.0, %v361
      %363 = vmatprep.mubr.f32.mxu0 %v200
      %364 = vmatmul.mubr.f32.gmra.mxu0 %v199
      %v365 = vpop.f32.mrf.mxu0
      %v366 = vadd.f32 0.0, %v365
      %v367 = vpop.f32.mrf.mxu0
      %v368 = vadd.f32 0.0, %v367
      %369 = vmatprep.mubr.f32.mxu0 %v202
      %370 = vmatmul.mubr.f32.gmra.mxu0 %v201
      %v371 = vpop.f32.mrf.mxu0
      %v372 = vadd.f32 0.0, %v371
      %v373 = vpop.f32.mrf.mxu0
      %v374 = vadd.f32 0.0, %v373
      %375 = vmatprep.mubr.f32.mxu0 %v204
      %376 = vmatmul.mubr.f32.gmra.mxu0 %v203
      %v377 = vpop.f32.mrf.mxu0
      %v378 = vadd.f32 0.0, %v377
      %v379 = vpop.f32.mrf.mxu0
      %v380 = vadd.f32 0.0, %v379
      %381 = vmatprep.mubr.f32.mxu0 %v206
      %382 = vmatmul.mubr.f32.gmra.mxu0 %v205
      %v383 = vpop.f32.mrf.mxu0
      %v384 = vadd.f32 0.0, %v383
      %v385 = vpop.f32.mrf.mxu0
      %v386 = vadd.f32 0.0, %v385
      %387 = vmatprep.mubr.f32.mxu0 %v208
      %388 = vmatmul.mubr.f32.gmra.mxu0 %v207
      %v389 = vpop.f32.mrf.mxu0
      %v390 = vadd.f32 0.0, %v389
      %v391 = vpop.f32.mrf.mxu0
      %v392 = vadd.f32 0.0, %v391
      %393 = vmatprep.mubr.f32.mxu0 %v210
      %394 = vmatmul.mubr.f32.gmra.mxu0 %v209
      %v395 = vpop.f32.mrf.mxu0
      %v396 = vadd.f32 0.0, %v395
      %v397 = vpop.f32.mrf.mxu0
      %v398 = vadd.f32 0.0, %v397
      %399 = vmatprep.mubr.f32.mxu0 %v212
      %400 = vmatmul.mubr.f32.gmra.mxu0 %v211
      %v401 = vpop.f32.mrf.mxu0
      %v402 = vadd.f32 0.0, %v401
      %v403 = vpop.f32.mrf.mxu0
      %v404 = vadd.f32 0.0, %v403
      %405 = vmatprep.mubr.f32.mxu0 %v214
      %406 = vmatmul.mubr.f32.gmra.mxu0 %v213
      %v407 = vpop.f32.mrf.mxu0
      %v408 = vadd.f32 0.0, %v407
      %v409 = vpop.f32.mrf.mxu0
      %v410 = vadd.f32 0.0, %v409
      %411 = vmatprep.mubr.f32.mxu0 %v216
      %412 = vmatmul.mubr.f32.gmra.mxu0 %v215
      %v413 = vpop.f32.mrf.mxu0
      %v414 = vadd.f32 0.0, %v413
      %v415 = vpop.f32.mrf.mxu0
      %v416 = vadd.f32 0.0, %v415
      %417 = vmatprep.mubr.f32.mxu0 %v218
      %418 = vmatmul.mubr.f32.gmra.mxu0 %v217
      %v419 = vpop.f32.mrf.mxu0
      %v420 = vadd.f32 0.0, %v419
      %v421 = vpop.f32.mrf.mxu0
      %v422 = vadd.f32 0.0, %v421
      %423 = vmatprep.mubr.f32.mxu0 %v220
      %424 = vmatmul.mubr.f32.gmra.mxu0 %v219
      %v425 = vpop.f32.mrf.mxu0
      %v426 = vadd.f32 0.0, %v425
      %v427 = vpop.f32.mrf.mxu0
      %v428 = vadd.f32 0.0, %v427
      %429 = vmatprep.mubr.f32.mxu0 %v222
      %430 = vmatmul.mubr.f32.gmra.mxu0 %v221
      %v431 = vpop.f32.mrf.mxu0
      %v432 = vadd.f32 0.0, %v431
      %v433 = vpop.f32.mrf.mxu0
      %v434 = vadd.f32 0.0, %v433
      %435 = vmatprep.mubr.f32.mxu0 %v224
      %436 = vmatmul.mubr.f32.gmra.mxu0 %v223
      %v437 = vpop.f32.mrf.mxu0
      %v438 = vadd.f32 0.0, %v437
      %v439 = vpop.f32.mrf.mxu0
      %v440 = vadd.f32 0.0, %v439
      %441 = vmatprep.mubr.f32.mxu0 %v226
      %442 = vmatmul.mubr.f32.gmra.mxu0 %v225
      %v443 = vpop.f32.mrf.mxu0
      %v444 = vadd.f32 0.0, %v443
      %v445 = vpop.f32.mrf.mxu0
      %v446 = vadd.f32 0.0, %v445
      %447 = vmatprep.mubr.f32.mxu0 %v228
      %448 = vmatmul.mubr.f32.gmra.mxu0 %v227
      %v449 = vpop.f32.mrf.mxu0
      %v450 = vadd.f32 0.0, %v449
      %v451 = vpop.f32.mrf.mxu0
      %v452 = vadd.f32 0.0, %v451
      %453 = vdwg.mxu0
      %454 = vst [vmem:[%s194] sm:$0xff] %v360
      %455 = vst [vmem:[%s194 + $0x8] sm:$0xff] %v362
      %456 = vst [vmem:[%s194 + $0x10] sm:$0xff] %v366
      %457 = vst [vmem:[%s194 + $0x18] sm:$0xff] %v368
      %458 = vst [vmem:[%s194 + $0x20] sm:$0xff] %v372
      %459 = vst [vmem:[%s194 + $0x28] sm:$0xff] %v374
      %460 = vst [vmem:[%s194 + $0x30] sm:$0xff] %v378
      %461 = vst [vmem:[%s194 + $0x38] sm:$0xff] %v380
      %462 = vst [vmem:[%s194 + $0x40] sm:$0xff] %v384
      %463 = vst [vmem:[%s194 + $0x48] sm:$0xff] %v386
      %464 = vst [vmem:[%s194 + $0x50] sm:$0xff] %v390
      %465 = vst [vmem:[%s194 + $0x58] sm:$0xff] %v392
      %466 = vst [vmem:[%s194 + $0x60] sm:$0xff] %v396
      %467 = vst [vmem:[%s194 + $0x68] sm:$0xff] %v398
      %468 = vst [vmem:[%s194 + $0x70] sm:$0xff] %v402
      %469 = vst [vmem:[%s194 + $0x78] sm:$0xff] %v404
      %470 = vst [vmem:[%s194 + $0x80] sm:$0xff] %v408
      %471 = vst [vmem:[%s194 + $0x88] sm:$0xff] %v410
      %472 = vst [vmem:[%s194 + $0x90] sm:$0xff] %v414
      %473 = vst [vmem:[%s194 + $0x98] sm:$0xff] %v416
      %474 = vst [vmem:[%s194 + $0xa0] sm:$0xff] %v420
      %475 = vst [vmem:[%s194 + $0xa8] sm:$0xff] %v422
      %476 = vst [vmem:[%s194 + $0xb0] sm:$0xff] %v426
      %477 = vst [vmem:[%s194 + $0xb8] sm:$0xff] %v428
      %478 = vst [vmem:[%s194 + $0xc0] sm:$0xff] %v432
      %479 = vst [vmem:[%s194 + $0xc8] sm:$0xff] %v434
      %480 = vst [vmem:[%s194 + $0xd0] sm:$0xff] %v438
      %481 = vst [vmem:[%s194 + $0xd8] sm:$0xff] %v440
      %482 = vst [vmem:[%s194 + $0xe0] sm:$0xff] %v444
      %483 = vst [vmem:[%s194 + $0xe8] sm:$0xff] %v446
      %484 = vst [vmem:[%s194 + $0xf0] sm:$0xff] %v450
      %485 = vst [vmem:[%s194 + $0xf8] sm:$0xff] %v452
      %s486 = smul.u32 16, %s17
      %s487 = smul.u32 2, %s18
      %p488 = scmp.lt.s32.totalorder %s486, 31
      %s489 = scalar_select %p488, %s486, 31
      %p490 = scmp.lt.s32.totalorder %s487, 1
      %s491 = scalar_select %p490, %s487, 1
      %s492 = smul.addr %s489, 2
      %s493 = sadd.s32 %s491, %s492
      %s494 = smul.addr %s493, 8
      %s495 = scalar_lea.vmem %s2, %s494
      // Predicated region
      $region29: #{igae_decoder_forward.17} parent=27 // pred_check
        %p496 = pneg %p97
      $region30: #{igae_decoder_forward.17} parent=27 // pred_check_branch
        %498 = sbr.rel (%p496) target = $region32
      $region31: #{igae_decoder_forward.17} parent=27 // pred_region
        %s499 = smul.u32 16, %s17
        %s500 = smul.u32 2, %s18
      $region32: #{igae_decoder_forward.17} parent=27 // pred_fallthru
        _
    $region28: #{igae_decoder_forward.17} parent=5 // pred_fallthru
      _
    %p501 = scmp.le.s32.totalorder 2, %s8
    // Predicated region
    $region33: #{igae_decoder_forward.17} parent=5 // pred_check
      %p502 = pneg %p501
    $region34: #{igae_decoder_forward.17} parent=5 // pred_check_branch
      %504 = sbr.rel (%p502) target = $region36
    $region35: #{igae_decoder_forward.17} parent=5 // pred_region
      %s505 = ssub.s32 %s8, 2
      // Predicated region
      $region37: #{igae_decoder_forward.17} parent=35 // pred_check
        %p506 = pneg %p103
      $region38: #{igae_decoder_forward.17} parent=35 // pred_check_branch
        %508 = sbr.rel (%p506) target = $region40
      $region39: #{igae_decoder_forward.17} parent=35 // pred_region
        %s509 = smul.u32 16, %s19
        %s510 = smul.u32 2, %s20
        %p511 = scmp.lt.s32.totalorder %s509, 31
        %s512 = scalar_select %p511, %s509, 31
        %p513 = scmp.lt.s32.totalorder %s510, 1
        %s514 = scalar_select %p513, %s510, 1
        %s515 = smul.addr %s512, 2
        %s516 = sadd.s32 %s514, %s515
        %s517 = smul.addr %s516, 8
        %s518 = scalar_lea.vmem %s2, %s517
      $region40: #{igae_decoder_forward.17} parent=35 // pred_fallthru
        _
    $region36: #{igae_decoder_forward.17} parent=5 // pred_fallthru
      _
  $region6: #{igae_decoder_forward.17} parent=0 // loop_footer
    %s12 = sadd.s32 1, %s8
  $region7: #{igae_decoder_forward.17} parent=0 // loop_footer_branch
    %7 = sbr.rel target = $region3
  $region8: #{igae_decoder_forward.17} parent=0 // loop_exit
    _

// kernel: igae_decoder_forward.19
$region0: #{igae_decoder_forward.19}
  #allocation0 [shape = 'u32[]', space=smem, size = 0x4, offset = 0x4, fixed_abs, tag = 'smem constant byte address 0x4 - core index']
  #allocation1 [shape = 'u32[144,128]{1,0:T(1,128)}', space=vmem, size = 0x12000, scoped, tag = 'internal scratch']
  %s0 = inlined_call_operand.vmem [shape: f32[256,256], index: 0, kind: input, shape index: {}]
  %s1 = inlined_call_operand.vmem [shape: f32[256,256], index: 1, kind: input, shape index: {}]
  %s2 = inlined_call_operand.vmem [shape: f32[256,256], index: 2, kind: output, shape index: {}]
  %s3 = sld [smem:[#allocation0]]
  $region41: #{igae_decoder_forward.19} parent=0
    _
  %s5 = ssub.s32 1, %s3
  %s6 = scalar_select 0, %s5, %s3
  loop: start=0, step=1, limit=4
  $region2: #{igae_decoder_forward.19} parent=0 // loop_pre_header
    _
  $region3: #{igae_decoder_forward.19} parent=0 // loop_header
    %s8 = sphi 0, %s12
    %p9 = scmp.ge.s32.totalorder %s8, 4
    %s15 = sphi 0, %s27
    %s16 = sphi 0, %s23
    %s17 = sphi 0, %s15
    %s18 = sphi 0, %s16
    %s19 = sphi 0, %s17
    %s20 = sphi 0, %s18
    %s30 = sphi 0, %s32
    %s33 = sphi 0, %s30
    %s34 = sphi 0, %s33
    %s50 = sphi 0, %s34
    %s56 = sphi 0, %s58
    %s59 = sphi 0, %s56
    %s60 = sphi 0, %s59
    %s76 = sphi 0, %s60
    %s84 = sphi 0, %s86
    %s87 = sphi 0, %s84
    %s88 = sphi 0, %s87
    %s104 = sphi 0, %s88
  $region4: #{igae_decoder_forward.19} parent=0 // loop_header_branch
    %11 = sbr.rel (%p9) target = $region8
  $region5: #{igae_decoder_forward.19} parent=0 // loop_body
    %s13 = ssub.s32 %s8, 1
    %s14 = ssub.s32 %s8, 2
    %s21 = sadd.s32 1, %s16
    %p22 = scmp.ge.s32.totalorder %s21, 1
    %s23 = scalar_select %p22, 0, %s21
    %s24 = sadd.s32 1, %s15
    %s25 = scalar_select %p22, %s24, %s15
    %p26 = scmp.ge.s32.totalorder %s25, 2
    %s27 = scalar_select %p26, 0, %s25
    %s28 = ssub.s32 %s15, %s27
    %p29 = scmp.eq.s32.totalorder %s28, 0
    %s31 = sadd.s32 %s30, 1
    %s32 = scalar_select %p29, %s30, %s31
    %p35 = pneg %p29
    %p36 = scmp.eq.s32.totalorder %s8, 1
    %p37 = por %p35, %p36
    %p38 = scmp.ne.s32.totalorder %s30, %s33
    %p39 = scmp.eq.s32.totalorder %s8, 0
    %p40 = por %p38, %p39
    %p41 = scmp.ne.s32.totalorder %s30, %s33
    %p42 = scmp.eq.s32.totalorder %s13, 1
    %p43 = por %p41, %p42
    %p44 = scmp.ne.s32.totalorder %s33, %s34
    %p45 = scmp.eq.s32.totalorder %s13, 0
    %p46 = por %p44, %p45
    %p47 = scmp.ne.s32.totalorder %s33, %s34
    %p48 = scmp.eq.s32.totalorder %s14, 1
    %p49 = por %p47, %p48
    %p51 = scmp.ne.s32.totalorder %s34, %s50
    %p52 = scmp.eq.s32.totalorder %s14, 0
    %p53 = por %p51, %p52
    %s54 = ssub.s32 %s16, %s23
    %p55 = scmp.eq.s32.totalorder %s54, 0
    %s57 = sadd.s32 %s56, 1
    %s58 = scalar_select %p55, %s56, %s57
    %p61 = pneg %p55
    %p62 = scmp.eq.s32.totalorder %s8, 1
    %p63 = por %p61, %p62
    %p64 = scmp.ne.s32.totalorder %s56, %s59
    %p65 = scmp.eq.s32.totalorder %s8, 0
    %p66 = por %p64, %p65
    %p67 = scmp.ne.s32.totalorder %s56, %s59
    %p68 = scmp.eq.s32.totalorder %s13, 1
    %p69 = por %p67, %p68
    %p70 = scmp.ne.s32.totalorder %s59, %s60
    %p71 = scmp.eq.s32.totalorder %s13, 0
    %p72 = por %p70, %p71
    %p73 = scmp.ne.s32.totalorder %s59, %s60
    %p74 = scmp.eq.s32.totalorder %s14, 1
    %p75 = por %p73, %p74
    %p77 = scmp.ne.s32.totalorder %s60, %s76
    %p78 = scmp.eq.s32.totalorder %s14, 0
    %p79 = por %p77, %p78
    %s80 = ssub.s32 %s15, %s27
    %s81 = ssub.s32 %s16, %s23
    %s82 = sor.u32 %s80, %s81
    %p83 = scmp.eq.s32.totalorder %s82, 0
    %s85 = sadd.s32 %s84, 1
    %s86 = scalar_select %p83, %s84, %s85
    %p89 = pneg %p83
    %p90 = scmp.eq.s32.totalorder %s8, 1
    %p91 = por %p89, %p90
    %p92 = scmp.ne.s32.totalorder %s84, %s87
    %p93 = scmp.eq.s32.totalorder %s8, 0
    %p94 = por %p92, %p93
    %p95 = scmp.ne.s32.totalorder %s84, %s87
    %p96 = scmp.eq.s32.totalorder %s13, 1
    %p97 = por %p95, %p96
    %p98 = scmp.ne.s32.totalorder %s87, %s88
    %p99 = scmp.eq.s32.totalorder %s13, 0
    %p100 = por %p98, %p99
    %p101 = scmp.ne.s32.totalorder %s87, %s88
    %p102 = scmp.eq.s32.totalorder %s14, 1
    %p103 = por %p101, %p102
    %p105 = scmp.ne.s32.totalorder %s88, %s104
    %p106 = scmp.eq.s32.totalorder %s14, 0
    %p107 = por %p105, %p106
    %p108 = scmp.le.s32.totalorder 1, %s8
    %p109 = scmp.lt.s32.totalorder %s8, 3
    %p110 = pnand %p108, %p109
    %p111 = pneg %p110
    // Predicated region
    $region9: #{igae_decoder_forward.19} parent=5 // pred_check
      _
    $region10: #{igae_decoder_forward.19} parent=5 // pred_check_branch
      %113 = sbr.rel (%p110) target = $region12
    $region11: #{igae_decoder_forward.19} parent=5 // pred_region
      %s114 = ssub.s32 %s8, 1
      // Predicated region
      $region13: #{igae_decoder_forward.19} parent=11 // pred_check
        %p115 = pneg %p72
      $region14: #{igae_decoder_forward.19} parent=11 // pred_check_branch
        %117 = sbr.rel (%p115) target = $region16
      $region15: #{igae_decoder_forward.19} parent=11 // pred_region
        %s118 = smul.u32 2, %s18
        %p119 = scmp.lt.s32.totalorder %s118, 1
        %s120 = scalar_select %p119, %s118, 1
        %s121 = smul.addr %s120, 8
        %s122 = scalar_lea.vmem %s1, %s121
        %s123 = smul.u32 2, %s18
      $region16: #{igae_decoder_forward.19} parent=11 // pred_fallthru
        _
    $region12: #{igae_decoder_forward.19} parent=5 // pred_fallthru
      _
    %p124 = scmp.lt.s32.totalorder %s8, 2
    // Predicated region
    $region17: #{igae_decoder_forward.19} parent=5 // pred_check
      %p125 = pneg %p124
    $region18: #{igae_decoder_forward.19} parent=5 // pred_check_branch
      %127 = sbr.rel (%p125) target = $region20
    $region19: #{igae_decoder_forward.19} parent=5 // pred_region
      // Predicated region
      $region21: #{igae_decoder_forward.19} parent=19 // pred_check
        %p128 = pneg %p40
      $region22: #{igae_decoder_forward.19} parent=19 // pred_check_branch
        %130 = sbr.rel (%p128) target = $region24
      $region23: #{igae_decoder_forward.19} parent=19 // pred_region
        %s131 = smul.u32 16, %s15
        %p132 = scmp.lt.s32.totalorder %s131, 31
        %s133 = scalar_select %p132, %s131, 31
        %s134 = smul.addr %s133, 2
        %s135 = smul.addr %s134, 8
        %s136 = scalar_lea.vmem %s0, %s135
        %s137 = smul.u32 16, %s15
      $region24: #{igae_decoder_forward.19} parent=19 // pred_fallthru
        _
    $region20: #{igae_decoder_forward.19} parent=5 // pred_fallthru
      _
    %p138 = scmp.le.s32.totalorder 1, %s8
    %p139 = scmp.lt.s32.totalorder %s8, 3
    %p140 = pnand %p138, %p139
    %p141 = pneg %p140
    // Predicated region
    $region25: #{igae_decoder_forward.19} parent=5 // pred_check
      _
    $region26: #{igae_decoder_forward.19} parent=5 // pred_check_branch
      %143 = sbr.rel (%p140) target = $region28
    $region27: #{igae_decoder_forward.19} parent=5 // pred_region
      %s144 = ssub.s32 %s8, 1
      %s145 = smul.u32 16, %s17
      %p146 = scmp.lt.s32.totalorder %s145, 31
      %s147 = scalar_select %p146, %s145, 31
      %s148 = smul.addr %s147, 2
      %s149 = smul.addr %s148, 8
      %s150 = scalar_lea.vmem %s0, %s149
      %p151 = pneg %p46
      %p152 = pneg %p43
      %s153 = smul.u32 2, %s18
      %p154 = scmp.lt.s32.totalorder %s153, 1
      %s155 = scalar_select %p154, %s153, 1
      %s156 = smul.addr %s155, 8
      %s157 = scalar_lea.vmem %s1, %s156
      %p158 = pneg %p72
      %p159 = pneg %p69
      %p160 = pneg %p100
      %p161 = pneg %p97
      %s162 = smul.u32 16, %s17
      %s163 = smul.u32 2, %s18
      %p164 = scmp.lt.s32.totalorder %s162, 31
      %s165 = scalar_select %p164, %s162, 31
      %p166 = scmp.lt.s32.totalorder %s163, 1
      %s167 = scalar_select %p166, %s163, 1
      %s168 = smul.addr %s165, 2
      %s169 = sadd.s32 %s167, %s168
      %s170 = smul.addr %s169, 8
      %s171 = scalar_lea.vmem %s2, %s170
      %s172 = smul.u32 16, %s17
      %p173 = scmp.lt.s32.totalorder %s172, 31
      %s174 = scalar_select %p173, %s172, 31
      %s175 = smul.addr %s174, 2
      %s176 = smul.addr %s175, 8
      %s177 = scalar_lea.vmem %s0, %s176
      %s178 = smul.u32 16, %s17
      %s179 = smul.u32 2, %s18
      %p180 = scmp.lt.s32.totalorder %s179, 1
      %s181 = scalar_select %p180, %s179, 1
      %s182 = smul.addr %s181, 8
      %s183 = scalar_lea.vmem %s1, %s182
      %s184 = smul.u32 2, %s18
      %s185 = smul.u32 16, %s17
      %s186 = smul.u32 2, %s18
      %p187 = scmp.lt.s32.totalorder %s185, 31
      %s188 = scalar_select %p187, %s185, 31
      %p189 = scmp.lt.s32.totalorder %s186, 1
      %s190 = scalar_select %p189, %s186, 1
      %s191 = smul.addr %s188, 2
      %s192 = sadd.s32 %s190, %s191
      %s193 = smul.addr %s192, 8
      %s194 = scalar_lea.vmem %s2, %s193
      %s195 = smul.u32 16, %s17
      %s196 = smul.u32 2, %s18
      %v197 = vld [vmem:[%s177] sm:$0xff]
      %v198 = vld [vmem:[%s177 + $0x8] sm:$0xff]
      %v199 = vld [vmem:[%s177 + $0x10] sm:$0xff]
      %v200 = vld [vmem:[%s177 + $0x18] sm:$0xff]
      %v201 = vld [vmem:[%s177 + $0x20] sm:$0xff]
      %v202 = vld [vmem:[%s177 + $0x28] sm:$0xff]
      %v203 = vld [vmem:[%s177 + $0x30] sm:$0xff]
      %v204 = vld [vmem:[%s177 + $0x38] sm:$0xff]
      %v205 = vld [vmem:[%s177 + $0x40] sm:$0xff]
      %v206 = vld [vmem:[%s177 + $0x48] sm:$0xff]
      %v207 = vld [vmem:[%s177 + $0x50] sm:$0xff]
      %v208 = vld [vmem:[%s177 + $0x58] sm:$0xff]
      %v209 = vld [vmem:[%s177 + $0x60] sm:$0xff]
      %v210 = vld [vmem:[%s177 + $0x68] sm:$0xff]
      %v211 = vld [vmem:[%s177 + $0x70] sm:$0xff]
      %v212 = vld [vmem:[%s177 + $0x78] sm:$0xff]
      %v213 = vld [vmem:[%s177 + $0x80] sm:$0xff]
      %v214 = vld [vmem:[%s177 + $0x88] sm:$0xff]
      %v215 = vld [vmem:[%s177 + $0x90] sm:$0xff]
      %v216 = vld [vmem:[%s177 + $0x98] sm:$0xff]
      %v217 = vld [vmem:[%s177 + $0xa0] sm:$0xff]
      %v218 = vld [vmem:[%s177 + $0xa8] sm:$0xff]
      %v219 = vld [vmem:[%s177 + $0xb0] sm:$0xff]
      %v220 = vld [vmem:[%s177 + $0xb8] sm:$0xff]
      %v221 = vld [vmem:[%s177 + $0xc0] sm:$0xff]
      %v222 = vld [vmem:[%s177 + $0xc8] sm:$0xff]
      %v223 = vld [vmem:[%s177 + $0xd0] sm:$0xff]
      %v224 = vld [vmem:[%s177 + $0xd8] sm:$0xff]
      %v225 = vld [vmem:[%s177 + $0xe0] sm:$0xff]
      %v226 = vld [vmem:[%s177 + $0xe8] sm:$0xff]
      %v227 = vld [vmem:[%s177 + $0xf0] sm:$0xff]
      %v228 = vld [vmem:[%s177 + $0xf8] sm:$0xff]
      %v229 = vld [vmem:[%s183] sm:$0xff]
      %v230 = vld [vmem:[%s183 + $0x8] sm:$0xff]
      %v231 = vld [vmem:[%s183 + $0x10] sm:$0xff]
      %v232 = vld [vmem:[%s183 + $0x18] sm:$0xff]
      %v233 = vld [vmem:[%s183 + $0x20] sm:$0xff]
      %v234 = vld [vmem:[%s183 + $0x28] sm:$0xff]
      %v235 = vld [vmem:[%s183 + $0x30] sm:$0xff]
      %v236 = vld [vmem:[%s183 + $0x38] sm:$0xff]
      %v237 = vld [vmem:[%s183 + $0x40] sm:$0xff]
      %v238 = vld [vmem:[%s183 + $0x48] sm:$0xff]
      %v239 = vld [vmem:[%s183 + $0x50] sm:$0xff]
      %v240 = vld [vmem:[%s183 + $0x58] sm:$0xff]
      %v241 = vld [vmem:[%s183 + $0x60] sm:$0xff]
      %v242 = vld [vmem:[%s183 + $0x68] sm:$0xff]
      %v243 = vld [vmem:[%s183 + $0x70] sm:$0xff]
      %v244 = vld [vmem:[%s183 + $0x78] sm:$0xff]
      %v245 = vld [vmem:[%s183 + $0x80] sm:$0xff]
      %v246 = vld [vmem:[%s183 + $0x88] sm:$0xff]
      %v247 = vld [vmem:[%s183 + $0x90] sm:$0xff]
      %v248 = vld [vmem:[%s183 + $0x98] sm:$0xff]
      %v249 = vld [vmem:[%s183 + $0xa0] sm:$0xff]
      %v250 = vld [vmem:[%s183 + $0xa8] sm:$0xff]
      %v251 = vld [vmem:[%s183 + $0xb0] sm:$0xff]
      %v252 = vld [vmem:[%s183 + $0xb8] sm:$0xff]
      %v253 = vld [vmem:[%s183 + $0xc0] sm:$0xff]
      %v254 = vld [vmem:[%s183 + $0xc8] sm:$0xff]
      %v255 = vld [vmem:[%s183 + $0xd0] sm:$0xff]
      %v256 = vld [vmem:[%s183 + $0xd8] sm:$0xff]
      %v257 = vld [vmem:[%s183 + $0xe0] sm:$0xff]
      %v258 = vld [vmem:[%s183 + $0xe8] sm:$0xff]
      %v259 = vld [vmem:[%s183 + $0xf0] sm:$0xff]
      %v260 = vld [vmem:[%s183 + $0xf8] sm:$0xff]
      %v261 = vld [vmem:[%s183 + $0x100] sm:$0xff]
      %v262 = vld [vmem:[%s183 + $0x108] sm:$0xff]
      %v263 = vld [vmem:[%s183 + $0x110] sm:$0xff]
      %v264 = vld [vmem:[%s183 + $0x118] sm:$0xff]
      %v265 = vld [vmem:[%s183 + $0x120] sm:$0xff]
      %v266 = vld [vmem:[%s183 + $0x128] sm:$0xff]
      %v267 = vld [vmem:[%s183 + $0x130] sm:$0xff]
      %v268 = vld [vmem:[%s183 + $0x138] sm:$0xff]
      %v269 = vld [vmem:[%s183 + $0x140] sm:$0xff]
      %v270 = vld [vmem:[%s183 + $0x148] sm:$0xff]
      %v271 = vld [vmem:[%s183 + $0x150] sm:$0xff]
      %v272 = vld [vmem:[%s183 + $0x158] sm:$0xff]
      %v273 = vld [vmem:[%s183 + $0x160] sm:$0xff]
      %v274 = vld [vmem:[%s183 + $0x168] sm:$0xff]
      %v275 = vld [vmem:[%s183 + $0x170] sm:$0xff]
      %v276 = vld [vmem:[%s183 + $0x178] sm:$0xff]
      %v277 = vld [vmem:[%s183 + $0x180] sm:$0xff]
      %v278 = vld [vmem:[%s183 + $0x188] sm:$0xff]
      %v279 = vld [vmem:[%s183 + $0x190] sm:$0xff]
      %v280 = vld [vmem:[%s183 + $0x198] sm:$0xff]
      %v281 = vld [vmem:[%s183 + $0x1a0] sm:$0xff]
      %v282 = vld [vmem:[%s183 + $0x1a8] sm:$0xff]
      %v283 = vld [vmem:[%s183 + $0x1b0] sm:$0xff]
      %v284 = vld [vmem:[%s183 + $0x1b8] sm:$0xff]
      %v285 = vld [vmem:[%s183 + $0x1c0] sm:$0xff]
      %v286 = vld [vmem:[%s183 + $0x1c8] sm:$0xff]
      %v287 = vld [vmem:[%s183 + $0x1d0] sm:$0xff]
      %v288 = vld [vmem:[%s183 + $0x1d8] sm:$0xff]
      %v289 = vld [vmem:[%s183 + $0x1e0] sm:$0xff]
      %v290 = vld [vmem:[%s183 + $0x1e8] sm:$0xff]
      %v291 = vld [vmem:[%s183 + $0x1f0] sm:$0xff]
      %v292 = vld [vmem:[%s183 + $0x1f8] sm:$0xff]
      %293 = vmatprep.subr.mxu0 %v260
      %294 = vmatpush1.msra.mxu0 %v259
      %295 = vmatprep.subr.mxu0 %v258
      %296 = vmatpush1.msra.mxu0 %v257
      %297 = vmatprep.subr.mxu0 %v256
      %298 = vmatpush1.msra.mxu0 %v255
      %299 = vmatprep.subr.mxu0 %v254
      %300 = vmatpush1.msra.mxu0 %v253
      %301 = vmatprep.subr.mxu0 %v252
      %302 = vmatpush1.msra.mxu0 %v251
      %303 = vmatprep.subr.mxu0 %v250
      %304 = vmatpush1.msra.mxu0 %v249
      %305 = vmatprep.subr.mxu0 %v248
      %306 = vmatpush1.msra.mxu0 %v247
      %307 = vmatprep.subr.mxu0 %v246
      %308 = vmatpush1.msra.mxu0 %v245
      %309 = vmatprep.subr.mxu0 %v244
      %310 = vmatpush1.msra.mxu0 %v243
      %311 = vmatprep.subr.mxu0 %v242
      %312 = vmatpush1.msra.mxu0 %v241
      %313 = vmatprep.subr.mxu0 %v240
      %314 = vmatpush1.msra.mxu0 %v239
      %315 = vmatprep.subr.mxu0 %v238
      %316 = vmatpush1.msra.mxu0 %v237
      %317 = vmatprep.subr.mxu0 %v236
      %318 = vmatpush1.msra.mxu0 %v235
      %319 = vmatprep.subr.mxu0 %v234
      %320 = vmatpush1.msra.mxu0 %v233
      %321 = vmatprep.subr.mxu0 %v232
      %322 = vmatpush1.msra.mxu0 %v231
      %323 = vmatprep.subr.mxu0 %v230
      %324 = vmatpush1.msra.mxu0 %v229
      %325 = vmatprep.subr.mxu0 %v292
      %326 = vmatpush2.msra.mxu0 %v291
      %327 = vmatprep.subr.mxu0 %v290
      %328 = vmatpush2.msra.mxu0 %v289
      %329 = vmatprep.subr.mxu0 %v288
      %330 = vmatpush2.msra.mxu0 %v287
      %331 = vmatprep.subr.mxu0 %v286
      %332 = vmatpush2.msra.mxu0 %v285
      %333 = vmatprep.subr.mxu0 %v284
      %334 = vmatpush2.msra.mxu0 %v283
      %335 = vmatprep.subr.mxu0 %v282
      %336 = vmatpush2.msra.mxu0 %v281
      %337 = vmatprep.subr.mxu0 %v280
      %338 = vmatpush2.msra.mxu0 %v279
      %339 = vmatprep.subr.mxu0 %v278
      %340 = vmatpush2.msra.mxu0 %v277
      %341 = vmatprep.subr.mxu0 %v276
      %342 = vmatpush2.msra.mxu0 %v275
      %343 = vmatprep.subr.mxu0 %v274
      %344 = vmatpush2.msra.mxu0 %v273
      %345 = vmatprep.subr.mxu0 %v272
      %346 = vmatpush2.msra.mxu0 %v271
      %347 = vmatprep.subr.mxu0 %v270
      %348 = vmatpush2.msra.mxu0 %v269
      %349 = vmatprep.subr.mxu0 %v268
      %350 = vmatpush2.msra.mxu0 %v267
      %351 = vmatprep.subr.mxu0 %v266
      %352 = vmatpush2.msra.mxu0 %v265
      %353 = vmatprep.subr.mxu0 %v264
      %354 = vmatpush2.msra.mxu0 %v263
      %355 = vmatprep.subr.mxu0 %v262
      %356 = vmatpush2.msra.mxu0 %v261
      %357 = vmatprep.mubr.f32.mxu0 %v198
      %358 = vmatmul.mubr.f32.gmra.mxu0 %v197
      %v359 = vpop.f32.mrf.mxu0
      %v360 = vadd.f32 0.0, %v359
      %v361 = vpop.f32.mrf.mxu0
      %v362 = vadd.f32 0.0, %v361
      %363 = vmatprep.mubr.f32.mxu0 %v200
      %364 = vmatmul.mubr.f32.gmra.mxu0 %v199
      %v365 = vpop.f32.mrf.mxu0
      %v366 = vadd.f32 0.0, %v365
      %v367 = vpop.f32.mrf.mxu0
      %v368 = vadd.f32 0.0, %v367
      %369 = vmatprep.mubr.f32.mxu0 %v202
      %370 = vmatmul.mubr.f32.gmra.mxu0 %v201
      %v371 = vpop.f32.mrf.mxu0
      %v372 = vadd.f32 0.0, %v371
      %v373 = vpop.f32.mrf.mxu0
      %v374 = vadd.f32 0.0, %v373
      %375 = vmatprep.mubr.f32.mxu0 %v204
      %376 = vmatmul.mubr.f32.gmra.mxu0 %v203
      %v377 = vpop.f32.mrf.mxu0
      %v378 = vadd.f32 0.0, %v377
      %v379 = vpop.f32.mrf.mxu0
      %v380 = vadd.f32 0.0, %v379
      %381 = vmatprep.mubr.f32.mxu0 %v206
      %382 = vmatmul.mubr.f32.gmra.mxu0 %v205
      %v383 = vpop.f32.mrf.mxu0
      %v384 = vadd.f32 0.0, %v383
      %v385 = vpop.f32.mrf.mxu0
      %v386 = vadd.f32 0.0, %v385
      %387 = vmatprep.mubr.f32.mxu0 %v208
      %388 = vmatmul.mubr.f32.gmra.mxu0 %v207
      %v389 = vpop.f32.mrf.mxu0
      %v390 = vadd.f32 0.0, %v389
      %v391 = vpop.f32.mrf.mxu0
      %v392 = vadd.f32 0.0, %v391
      %393 = vmatprep.mubr.f32.mxu0 %v210
      %394 = vmatmul.mubr.f32.gmra.mxu0 %v209
      %v395 = vpop.f32.mrf.mxu0
      %v396 = vadd.f32 0.0, %v395
      %v397 = vpop.f32.mrf.mxu0
      %v398 = vadd.f32 0.0, %v397
      %399 = vmatprep.mubr.f32.mxu0 %v212
      %400 = vmatmul.mubr.f32.gmra.mxu0 %v211
      %v401 = vpop.f32.mrf.mxu0
      %v402 = vadd.f32 0.0, %v401
      %v403 = vpop.f32.mrf.mxu0
      %v404 = vadd.f32 0.0, %v403
      %405 = vmatprep.mubr.f32.mxu0 %v214
      %406 = vmatmul.mubr.f32.gmra.mxu0 %v213
      %v407 = vpop.f32.mrf.mxu0
      %v408 = vadd.f32 0.0, %v407
      %v409 = vpop.f32.mrf.mxu0
      %v410 = vadd.f32 0.0, %v409
      %411 = vmatprep.mubr.f32.mxu0 %v216
      %412 = vmatmul.mubr.f32.gmra.mxu0 %v215
      %v413 = vpop.f32.mrf.mxu0
      %v414 = vadd.f32 0.0, %v413
      %v415 = vpop.f32.mrf.mxu0
      %v416 = vadd.f32 0.0, %v415
      %417 = vmatprep.mubr.f32.mxu0 %v218
      %418 = vmatmul.mubr.f32.gmra.mxu0 %v217
      %v419 = vpop.f32.mrf.mxu0
      %v420 = vadd.f32 0.0, %v419
      %v421 = vpop.f32.mrf.mxu0
      %v422 = vadd.f32 0.0, %v421
      %423 = vmatprep.mubr.f32.mxu0 %v220
      %424 = vmatmul.mubr.f32.gmra.mxu0 %v219
      %v425 = vpop.f32.mrf.mxu0
      %v426 = vadd.f32 0.0, %v425
      %v427 = vpop.f32.mrf.mxu0
      %v428 = vadd.f32 0.0, %v427
      %429 = vmatprep.mubr.f32.mxu0 %v222
      %430 = vmatmul.mubr.f32.gmra.mxu0 %v221
      %v431 = vpop.f32.mrf.mxu0
      %v432 = vadd.f32 0.0, %v431
      %v433 = vpop.f32.mrf.mxu0
      %v434 = vadd.f32 0.0, %v433
      %435 = vmatprep.mubr.f32.mxu0 %v224
      %436 = vmatmul.mubr.f32.gmra.mxu0 %v223
      %v437 = vpop.f32.mrf.mxu0
      %v438 = vadd.f32 0.0, %v437
      %v439 = vpop.f32.mrf.mxu0
      %v440 = vadd.f32 0.0, %v439
      %441 = vmatprep.mubr.f32.mxu0 %v226
      %442 = vmatmul.mubr.f32.gmra.mxu0 %v225
      %v443 = vpop.f32.mrf.mxu0
      %v444 = vadd.f32 0.0, %v443
      %v445 = vpop.f32.mrf.mxu0
      %v446 = vadd.f32 0.0, %v445
      %447 = vmatprep.mubr.f32.mxu0 %v228
      %448 = vmatmul.mubr.f32.gmra.mxu0 %v227
      %v449 = vpop.f32.mrf.mxu0
      %v450 = vadd.f32 0.0, %v449
      %v451 = vpop.f32.mrf.mxu0
      %v452 = vadd.f32 0.0, %v451
      %453 = vdwg.mxu0
      %v454 = vxor.u32 %v360, 2147483648
      %v455 = vxor.u32 %v362, 2147483648
      %v456 = vxor.u32 %v366, 2147483648
      %v457 = vxor.u32 %v368, 2147483648
      %v458 = vxor.u32 %v372, 2147483648
      %v459 = vxor.u32 %v374, 2147483648
      %v460 = vxor.u32 %v378, 2147483648
      %v461 = vxor.u32 %v380, 2147483648
      %v462 = vxor.u32 %v384, 2147483648
      %v463 = vxor.u32 %v386, 2147483648
      %v464 = vxor.u32 %v390, 2147483648
      %v465 = vxor.u32 %v392, 2147483648
      %v466 = vxor.u32 %v396, 2147483648
      %v467 = vxor.u32 %v398, 2147483648
      %v468 = vxor.u32 %v402, 2147483648
      %v469 = vxor.u32 %v404, 2147483648
      %v470 = vxor.u32 %v408, 2147483648
      %v471 = vxor.u32 %v410, 2147483648
      %v472 = vxor.u32 %v414, 2147483648
      %v473 = vxor.u32 %v416, 2147483648
      %v474 = vxor.u32 %v420, 2147483648
      %v475 = vxor.u32 %v422, 2147483648
      %v476 = vxor.u32 %v426, 2147483648
      %v477 = vxor.u32 %v428, 2147483648
      %v478 = vxor.u32 %v432, 2147483648
      %v479 = vxor.u32 %v434, 2147483648
      %v480 = vxor.u32 %v438, 2147483648
      %v481 = vxor.u32 %v440, 2147483648
      %v482 = vxor.u32 %v444, 2147483648
      %v483 = vxor.u32 %v446, 2147483648
      %v484 = vxor.u32 %v450, 2147483648
      %v485 = vxor.u32 %v452, 2147483648
      %v486 = vmul.f32 %v454, 1.442695
      %v487 = vpow.pop %v486
      %v488 = vmul.f32 %v455, 1.442695
      %v489 = vpow.pop %v488
      %v490 = vmul.f32 %v456, 1.442695
      %v491 = vpow.pop %v490
      %v492 = vmul.f32 %v457, 1.442695
      %v493 = vpow.pop %v492
      %v494 = vmul.f32 %v458, 1.442695
      %v495 = vpow.pop %v494
      %v496 = vmul.f32 %v459, 1.442695
      %v497 = vpow.pop %v496
      %v498 = vmul.f32 %v460, 1.442695
      %v499 = vpow.pop %v498
      %v500 = vmul.f32 %v461, 1.442695
      %v501 = vpow.pop %v500
      %v502 = vmul.f32 %v462, 1.442695
      %v503 = vpow.pop %v502
      %v504 = vmul.f32 %v463, 1.442695
      %v505 = vpow.pop %v504
      %v506 = vmul.f32 %v464, 1.442695
      %v507 = vpow.pop %v506
      %v508 = vmul.f32 %v465, 1.442695
      %v509 = vpow.pop %v508
      %v510 = vmul.f32 %v466, 1.442695
      %v511 = vpow.pop %v510
      %v512 = vmul.f32 %v467, 1.442695
      %v513 = vpow.pop %v512
      %v514 = vmul.f32 %v468, 1.442695
      %v515 = vpow.pop %v514
      %v516 = vmul.f32 %v469, 1.442695
      %v517 = vpow.pop %v516
      %v518 = vmul.f32 %v470, 1.442695
      %v519 = vpow.pop %v518
      %v520 = vmul.f32 %v471, 1.442695
      %v521 = vpow.pop %v520
      %v522 = vmul.f32 %v472, 1.442695
      %v523 = vpow.pop %v522
      %v524 = vmul.f32 %v473, 1.442695
      %v525 = vpow.pop %v524
      %v526 = vmul.f32 %v474, 1.442695
      %v527 = vpow.pop %v526
      %v528 = vmul.f32 %v475, 1.442695
      %v529 = vpow.pop %v528
      %v530 = vmul.f32 %v476, 1.442695
      %v531 = vpow.pop %v530
      %v532 = vmul.f32 %v477, 1.442695
      %v533 = vpow.pop %v532
      %v534 = vmul.f32 %v478, 1.442695
      %v535 = vpow.pop %v534
      %v536 = vmul.f32 %v479, 1.442695
      %v537 = vpow.pop %v536
      %v538 = vmul.f32 %v480, 1.442695
      %v539 = vpow.pop %v538
      %v540 = vmul.f32 %v481, 1.442695
      %v541 = vpow.pop %v540
      %v542 = vmul.f32 %v482, 1.442695
      %v543 = vpow.pop %v542
      %v544 = vmul.f32 %v483, 1.442695
      %v545 = vpow.pop %v544
      %v546 = vmul.f32 %v484, 1.442695
      %v547 = vpow.pop %v546
      %v548 = vmul.f32 %v485, 1.442695
      %v549 = vpow.pop %v548
      %v550 = vadd.f32 %v487, 1.0
      %v551 = vadd.f32 %v489, 1.0
      %v552 = vadd.f32 %v491, 1.0
      %v553 = vadd.f32 %v493, 1.0
      %v554 = vadd.f32 %v495, 1.0
      %v555 = vadd.f32 %v497, 1.0
      %v556 = vadd.f32 %v499, 1.0
      %v557 = vadd.f32 %v501, 1.0
      %v558 = vadd.f32 %v503, 1.0
      %v559 = vadd.f32 %v505, 1.0
      %v560 = vadd.f32 %v507, 1.0
      %v561 = vadd.f32 %v509, 1.0
      %v562 = vadd.f32 %v511, 1.0
      %v563 = vadd.f32 %v513, 1.0
      %v564 = vadd.f32 %v515, 1.0
      %v565 = vadd.f32 %v517, 1.0
      %v566 = vadd.f32 %v519, 1.0
      %v567 = vadd.f32 %v521, 1.0
      %v568 = vadd.f32 %v523, 1.0
      %v569 = vadd.f32 %v525, 1.0
      %v570 = vadd.f32 %v527, 1.0
      %v571 = vadd.f32 %v529, 1.0
      %v572 = vadd.f32 %v531, 1.0
      %v573 = vadd.f32 %v533, 1.0
      %v574 = vadd.f32 %v535, 1.0
      %v575 = vadd.f32 %v537, 1.0
      %v576 = vadd.f32 %v539, 1.0
      %v577 = vadd.f32 %v541, 1.0
      %v578 = vadd.f32 %v543, 1.0
      %v579 = vadd.f32 %v545, 1.0
      %v580 = vadd.f32 %v547, 1.0
      %v581 = vadd.f32 %v549, 1.0
      %v582 = vrcp.pop %v550
      %v583 = vmul.f32 1.0, %v582
      %v584 = vrcp.pop %v551
      %v585 = vmul.f32 1.0, %v584
      %v586 = vrcp.pop %v552
      %v587 = vmul.f32 1.0, %v586
      %v588 = vrcp.pop %v553
      %v589 = vmul.f32 1.0, %v588
      %v590 = vrcp.pop %v554
      %v591 = vmul.f32 1.0, %v590
      %v592 = vrcp.pop %v555
      %v593 = vmul.f32 1.0, %v592
      %v594 = vrcp.pop %v556
      %v595 = vmul.f32 1.0, %v594
      %v596 = vrcp.pop %v557
      %v597 = vmul.f32 1.0, %v596
      %v598 = vrcp.pop %v558
      %v599 = vmul.f32 1.0, %v598
      %v600 = vrcp.pop %v559
      %v601 = vmul.f32 1.0, %v600
      %v602 = vrcp.pop %v560
      %v603 = vmul.f32 1.0, %v602
      %v604 = vrcp.pop %v561
      %v605 = vmul.f32 1.0, %v604
      %v606 = vrcp.pop %v562
      %v607 = vmul.f32 1.0, %v606
      %v608 = vrcp.pop %v563
      %v609 = vmul.f32 1.0, %v608
      %v610 = vrcp.pop %v564
      %v611 = vmul.f32 1.0, %v610
      %v612 = vrcp.pop %v565
      %v613 = vmul.f32 1.0, %v612
      %v614 = vrcp.pop %v566
      %v615 = vmul.f32 1.0, %v614
      %v616 = vrcp.pop %v567
      %v617 = vmul.f32 1.0, %v616
      %v618 = vrcp.pop %v568
      %v619 = vmul.f32 1.0, %v618
      %v620 = vrcp.pop %v569
      %v621 = vmul.f32 1.0, %v620
      %v622 = vrcp.pop %v570
      %v623 = vmul.f32 1.0, %v622
      %v624 = vrcp.pop %v571
      %v625 = vmul.f32 1.0, %v624
      %v626 = vrcp.pop %v572
      %v627 = vmul.f32 1.0, %v626
      %v628 = vrcp.pop %v573
      %v629 = vmul.f32 1.0, %v628
      %v630 = vrcp.pop %v574
      %v631 = vmul.f32 1.0, %v630
      %v632 = vrcp.pop %v575
      %v633 = vmul.f32 1.0, %v632
      %v634 = vrcp.pop %v576
      %v635 = vmul.f32 1.0, %v634
      %v636 = vrcp.pop %v577
      %v637 = vmul.f32 1.0, %v636
      %v638 = vrcp.pop %v578
      %v639 = vmul.f32 1.0, %v638
      %v640 = vrcp.pop %v579
      %v641 = vmul.f32 1.0, %v640
      %v642 = vrcp.pop %v580
      %v643 = vmul.f32 1.0, %v642
      %v644 = vrcp.pop %v581
      %v645 = vmul.f32 1.0, %v644
      %646 = vst [vmem:[%s194] sm:$0xff] %v583
      %647 = vst [vmem:[%s194 + $0x8] sm:$0xff] %v585
      %648 = vst [vmem:[%s194 + $0x10] sm:$0xff] %v587
      %649 = vst [vmem:[%s194 + $0x18] sm:$0xff] %v589
      %650 = vst [vmem:[%s194 + $0x20] sm:$0xff] %v591
      %651 = vst [vmem:[%s194 + $0x28] sm:$0xff] %v593
      %652 = vst [vmem:[%s194 + $0x30] sm:$0xff] %v595
      %653 = vst [vmem:[%s194 + $0x38] sm:$0xff] %v597
      %654 = vst [vmem:[%s194 + $0x40] sm:$0xff] %v599
      %655 = vst [vmem:[%s194 + $0x48] sm:$0xff] %v601
      %656 = vst [vmem:[%s194 + $0x50] sm:$0xff] %v603
      %657 = vst [vmem:[%s194 + $0x58] sm:$0xff] %v605
      %658 = vst [vmem:[%s194 + $0x60] sm:$0xff] %v607
      %659 = vst [vmem:[%s194 + $0x68] sm:$0xff] %v609
      %660 = vst [vmem:[%s194 + $0x70] sm:$0xff] %v611
      %661 = vst [vmem:[%s194 + $0x78] sm:$0xff] %v613
      %662 = vst [vmem:[%s194 + $0x80] sm:$0xff] %v615
      %663 = vst [vmem:[%s194 + $0x88] sm:$0xff] %v617
      %664 = vst [vmem:[%s194 + $0x90] sm:$0xff] %v619
      %665 = vst [vmem:[%s194 + $0x98] sm:$0xff] %v621
      %666 = vst [vmem:[%s194 + $0xa0] sm:$0xff] %v623
      %667 = vst [vmem:[%s194 + $0xa8] sm:$0xff] %v625
      %668 = vst [vmem:[%s194 + $0xb0] sm:$0xff] %v627
      %669 = vst [vmem:[%s194 + $0xb8] sm:$0xff] %v629
      %670 = vst [vmem:[%s194 + $0xc0] sm:$0xff] %v631
      %671 = vst [vmem:[%s194 + $0xc8] sm:$0xff] %v633
      %672 = vst [vmem:[%s194 + $0xd0] sm:$0xff] %v635
      %673 = vst [vmem:[%s194 + $0xd8] sm:$0xff] %v637
      %674 = vst [vmem:[%s194 + $0xe0] sm:$0xff] %v639
      %675 = vst [vmem:[%s194 + $0xe8] sm:$0xff] %v641
      %676 = vst [vmem:[%s194 + $0xf0] sm:$0xff] %v643
      %677 = vst [vmem:[%s194 + $0xf8] sm:$0xff] %v645
      %s678 = smul.u32 16, %s17
      %s679 = smul.u32 2, %s18
      %p680 = scmp.lt.s32.totalorder %s678, 31
      %s681 = scalar_select %p680, %s678, 31
      %p682 = scmp.lt.s32.totalorder %s679, 1
      %s683 = scalar_select %p682, %s679, 1
      %s684 = smul.addr %s681, 2
      %s685 = sadd.s32 %s683, %s684
      %s686 = smul.addr %s685, 8
      %s687 = scalar_lea.vmem %s2, %s686
      // Predicated region
      $region29: #{igae_decoder_forward.19} parent=27 // pred_check
        %p688 = pneg %p97
      $region30: #{igae_decoder_forward.19} parent=27 // pred_check_branch
        %690 = sbr.rel (%p688) target = $region32
      $region31: #{igae_decoder_forward.19} parent=27 // pred_region
        %s691 = smul.u32 16, %s17
        %s692 = smul.u32 2, %s18
      $region32: #{igae_decoder_forward.19} parent=27 // pred_fallthru
        _
    $region28: #{igae_decoder_forward.19} parent=5 // pred_fallthru
      _
    %p693 = scmp.le.s32.totalorder 2, %s8
    // Predicated region
    $region33: #{igae_decoder_forward.19} parent=5 // pred_check
      %p694 = pneg %p693
    $region34: #{igae_decoder_forward.19} parent=5 // pred_check_branch
      %696 = sbr.rel (%p694) target = $region36
    $region35: #{igae_decoder_forward.19} parent=5 // pred_region
      %s697 = ssub.s32 %s8, 2
      // Predicated region
      $region37: #{igae_decoder_forward.19} parent=35 // pred_check
        %p698 = pneg %p103
      $region38: #{igae_decoder_forward.19} parent=35 // pred_check_branch
        %700 = sbr.rel (%p698) target = $region40
      $region39: #{igae_decoder_forward.19} parent=35 // pred_region
        %s701 = smul.u32 16, %s19
        %s702 = smul.u32 2, %s20
        %p703 = scmp.lt.s32.totalorder %s701, 31
        %s704 = scalar_select %p703, %s701, 31
        %p705 = scmp.lt.s32.totalorder %s702, 1
        %s706 = scalar_select %p705, %s702, 1
        %s707 = smul.addr %s704, 2
        %s708 = sadd.s32 %s706, %s707
        %s709 = smul.addr %s708, 8
        %s710 = scalar_lea.vmem %s2, %s709
      $region40: #{igae_decoder_forward.19} parent=35 // pred_fallthru
        _
    $region36: #{igae_decoder_forward.19} parent=5 // pred_fallthru
      _
  $region6: #{igae_decoder_forward.19} parent=0 // loop_footer
    %s12 = sadd.s32 1, %s8
  $region7: #{igae_decoder_forward.19} parent=0 // loop_footer_branch
    %7 = sbr.rel target = $region3
  $region8: #{igae_decoder_forward.19} parent=0 // loop_exit
    _

</llo_original>
